<compile_context>
chip_gen: v7x
topology: tpu7x:2x2x1
jax: 0.10.0
libtpu: 0.0.40
codegen_flags: <defaults>
</compile_context>

<pallas_src>
import functools

import numpy as np
import jax
import jax.numpy as jnp
from jax import lax
from jax.experimental import pallas as pl
from jax.experimental.pallas import tpu as pltpu


def _leaky_relu(x, slope=0.3):
    return jnp.where(x >= 0, x, slope * x)


def iv_kernel(x_ref, masks_ref, w1_ref, b1_ref, w2_ref, b2_ref, w3_ref,
              b3_ref, o_ref, *, W):
    # x_ref    : (Cin, N) f32          N = BB*H*W (BB images on the lane axis)
    # masks_ref: (9, N)   f32 0/1 per-tap validity masks (tiled per image)
    # w1_ref   : (nh, Cin) f32         b1_ref: (nh, 1) f32
    # w2_ref   : (9, nh, nh) bf16      b2_ref: (nh, 1) f32   (tap-major)
    # w3_ref   : (cout3, nh) f32       b3_ref: (cout3, 1) f32
    # o_ref    : (Cin + cout3, N) f32  == (2*out_channels, N)
    Cin, N = x_ref.shape
    cout3 = w3_ref.shape[0]

    x = x_ref[...]                                            # (Cin, N) f32

    # fc1: 1x1 conv == channel matmul, + bias, LeakyReLU(0.3)
    h1 = jnp.dot(w1_ref[...], x, preferred_element_type=jnp.float32)
    h1 = _leaky_relu(h1 + b1_ref[...])                        # (nh, N) f32

    # fc2: 3x3 conv (padding=1) as 9 accumulated per-tap MXU matmuls.
    # Taps are built with lane-axis rolls (XLU) + precomputed edge masks
    # (which also zero any cross-image wrap when BB > 1), cast to bf16 and
    # accumulated in f32 — no (9*nh, N) stacked operand, no concat copies.
    acc = None
    tap = 0
    for dy in (-1, 0, 1):
        for dx in (-1, 0, 1):
            s = dy * W + dx
            if s == 0:
                shifted = h1                                  # center tap
            else:
                shifted = pltpu.roll(h1, (-s) % N, axis=1)
                shifted = shifted * masks_ref[tap:tap + 1, :]  # (1,N) bcast
            d = jnp.dot(w2_ref[tap], shifted.astype(jnp.bfloat16),
                        preferred_element_type=jnp.float32)
            acc = d if acc is None else acc + d
            tap += 1
    h2 = _leaky_relu(acc + b2_ref[...])                       # (nh, N) f32

    # fc3: 1x1 conv == channel matmul
    h3 = jnp.dot(w3_ref[...], h2, preferred_element_type=jnp.float32)
    h3 = h3 + b3_ref[...]                                     # (cout3, N)

    # fused torch.cat([x0, conv_out], dim=channel): two direct sub-stores
    o_ref[0:Cin, :] = x
    o_ref[Cin:Cin + cout3, :] = h3


def _tap_masks(H, W):
    """Static 0/1 validity masks (np.float32) for the 9 taps of a 3x3,
    padding=1 conv, for a single image's H*W lane block."""
    HW = H * W
    ys, xs = np.divmod(np.arange(HW), W)
    m = np.ones((9, HW), np.float32)
    t = 0
    for dy in (-1, 0, 1):
        for dx in (-1, 0, 1):
            valid = ((ys + dy >= 0) & (ys + dy < H) &
                     (xs + dx >= 0) & (xs + dx < W))
            m[t] = valid.astype(np.float32)
            t += 1
    return m


def _choose_block_batch(B, HW, max_lanes=4096):
    """Largest divisor of B that (a) keeps >= 2 grid steps when B >= 2 so
    both v7x TensorCores get work, and (b) bounds per-step lane width so
    all blocks fit comfortably in v7x's 64 MiB VMEM."""
    min_steps = 2 if B >= 2 else 1
    best = 1
    for bb in range(1, B + 1):
        if B % bb == 0 and bb * HW <= max_lanes and (B // bb) >= min_steps:
            best = bb
    return best


def initial_velocity_forward(x0_nchw, params, out_channels):
    """x0_nchw: (B, Cin, H, W). Returns (B, 2, out_channels, H, W) float32."""
    w1, b1, w2, b2, w3, b3 = params           # PyTorch OIHW conv layouts
    x0 = x0_nchw.astype(jnp.float32)
    B, Cin, H, W = x0.shape
    nh = w1.shape[0]
    cout3 = w3.shape[0]
    HW = H * W
    oc2 = Cin + cout3                          # == 2 * out_channels

    BB = _choose_block_batch(B, HW)            # images per grid step
    N = BB * HW                                # lane width per step

    # Channel-major, batch+spatial on lanes: one cheap wrapper transpose.
    x_lanes = x0.reshape(B, Cin, HW).transpose(1, 0, 2).reshape(Cin, B * HW)

    # Kernel-friendly weight layouts (tiny one-time reshapes).
    w1_mat = w1.reshape(nh, Cin).astype(jnp.float32)
    # (O,I,KH,KW) -> (KH,KW,O,I) -> (9, nh, nh): tap-major, bf16 for the MXU.
    w2_taps = jnp.transpose(w2, (2, 3, 0, 1)).reshape(9, nh, nh).astype(jnp.bfloat16)
    w3_mat = w3.reshape(cout3, nh).astype(jnp.float32)
    b1_col = b1.reshape(nh, 1).astype(jnp.float32)
    b2_col = b2.reshape(nh, 1).astype(jnp.float32)
    b3_col = b3.reshape(cout3, 1).astype(jnp.float32)
    masks = jnp.asarray(np.tile(_tap_masks(H, W), (1, BB)))   # (9, N) f32

    kernel = functools.partial(iv_kernel, W=W)
    out_lanes = pl.pallas_call(
        kernel,
        out_shape=jax.ShapeDtypeStruct((oc2, B * HW), jnp.float32),
        grid_spec=pltpu.PrefetchScalarGridSpec(
            num_scalar_prefetch=0,
            grid=(B // BB,),
            in_specs=[
                pl.BlockSpec((Cin, N), lambda i: (0, i)),
                pl.BlockSpec((9, N), lambda i: (0, 0)),
                pl.BlockSpec((nh, Cin), lambda i: (0, 0)),
                pl.BlockSpec((nh, 1), lambda i: (0, 0)),
                pl.BlockSpec((9, nh, nh), lambda i: (0, 0, 0)),
                pl.BlockSpec((nh, 1), lambda i: (0, 0)),
                pl.BlockSpec((cout3, nh), lambda i: (0, 0)),
                pl.BlockSpec((cout3, 1), lambda i: (0, 0)),
            ],
            out_specs=pl.BlockSpec((oc2, N), lambda i: (0, i)),
        ),
        compiler_params=pltpu.CompilerParams(
            dimension_semantics=("parallel",),
            vmem_limit_bytes=32 * 1024 * 1024),
    )(x_lanes, masks, w1_mat, b1_col, w2_taps, b2_col, w3_mat, b3_col)

    # (oc2, B*HW) -> (B, oc2, HW) -> (B, 2, oc, H, W)   (the einops rearrange)
    out = out_lanes.reshape(oc2, B, HW).transpose(1, 0, 2)
    return out.reshape(B, 2, out_channels, H, W)


def make_params(key, in_channels, out_channels, nhidden):
    """Deterministic synthetic parameters (PyTorch Conv2d OIHW layouts)."""
    cout3 = 2 * out_channels - in_channels
    ks = jax.random.split(key, 6)
    s1 = 1.0 / float(np.sqrt(in_channels))
    s2 = 1.0 / float(np.sqrt(9.0 * nhidden))
    s3 = 1.0 / float(np.sqrt(nhidden))
    w1 = jax.random.uniform(ks[0], (nhidden, in_channels, 1, 1), jnp.float32, -s1, s1)
    b1 = jax.random.uniform(ks[1], (nhidden,), jnp.float32, -s1, s1)
    w2 = jax.random.uniform(ks[2], (nhidden, nhidden, 3, 3), jnp.float32, -s2, s2)
    b2 = jax.random.uniform(ks[3], (nhidden,), jnp.float32, -s2, s2)
    w3 = jax.random.uniform(ks[4], (cout3, nhidden, 1, 1), jnp.float32, -s3, s3)
    b3 = jax.random.uniform(ks[5], (cout3,), jnp.float32, -s3, s3)
    return (w1, b1, w2, b2, w3, b3)


def reference_forward(x0_nchw, params, out_channels):
    """Pure-JAX reference (lax.conv, f32) for correctness check."""
    w1, b1, w2, b2, w3, b3 = params
    x0 = x0_nchw.astype(jnp.float32)
    B, _, H, W = x0.shape

    def conv(x, w_oihw, b, pad):
        y = lax.conv_general_dilated(
            x, w_oihw, window_strides=(1, 1), padding=[(pad, pad), (pad, pad)],
            dimension_numbers=("NCHW", "OIHW", "NCHW"))
        return y + b.reshape(1, -1, 1, 1)

    h = _leaky_relu(conv(x0, w1, b1, 0))
    h = _leaky_relu(conv(h, w2, b2, 1))
    h = conv(h, w3, b3, 0)
    out = jnp.concatenate([x0, h], axis=1)
    return out.reshape(B, 2, out_channels, H, W)


if __name__ == "__main__":
    B, in_channels, H, W = 2, 4, 16, 16
    out_channels, nhidden = 4, 32
    assert 3 * out_channels >= in_channels

    key = jax.random.PRNGKey(0)
    kx, kp = jax.random.split(key)
    x0 = jax.random.normal(kx, (B, in_channels, H, W), jnp.float32)
    params = make_params(kp, in_channels, out_channels, nhidden)

    out = initial_velocity_forward(x0, params, out_channels)
    out = jax.block_until_ready(out)

    ref = jax.block_until_ready(reference_forward(x0, params, out_channels))
    assert out.shape == (B, 2, out_channels, H, W), out.shape
    # fc2 path runs in bf16 on the MXU (per perf review) -> bf16-level tolerance
    # against the f32 lax.conv reference.
    assert jnp.allclose(out, ref, rtol=2e-2, atol=2e-2), float(
        jnp.max(jnp.abs(out - ref)))

    print("KERNEL_OK")
</pallas_src>

<mosaic_0001>
module attributes {stable_mosaic.version = 11 : i64} {
  func.func @iv_kernel(%arg0: i32, %arg1: memref<4x256xf32, #tpu.memory_space<vmem>>, %arg2: memref<9x256xf32, #tpu.memory_space<vmem>>, %arg3: memref<32x4xf32, #tpu.memory_space<vmem>>, %arg4: memref<32x1xf32, #tpu.memory_space<vmem>>, %arg5: memref<9x32x32xbf16, #tpu.memory_space<vmem>>, %arg6: memref<32x1xf32, #tpu.memory_space<vmem>>, %arg7: memref<4x32xf32, #tpu.memory_space<vmem>>, %arg8: memref<4x1xf32, #tpu.memory_space<vmem>>, %arg9: memref<8x256xf32, #tpu.memory_space<vmem>>) attributes {dimension_semantics = [#tpu.dimension_semantics<parallel>], iteration_bounds = array<i64: 2>, scalar_prefetch = 0 : i64, scratch_operands = 0 : i64, tpu.core_type = #tpu.core_type<tc>, window_params = [{transform_indices = @transform_0, window_bounds = array<i64: 4, 256>}, {pipeline_mode = #tpu.pipeline_mode<synchronous>, transform_indices = @transform_1, window_bounds = array<i64: 9, 256>}, {pipeline_mode = #tpu.pipeline_mode<synchronous>, transform_indices = @transform_2, window_bounds = array<i64: 32, 4>}, {pipeline_mode = #tpu.pipeline_mode<synchronous>, transform_indices = @transform_3, window_bounds = array<i64: 32, 1>}, {pipeline_mode = #tpu.pipeline_mode<synchronous>, transform_indices = @transform_4, window_bounds = array<i64: 9, 32, 32>}, {pipeline_mode = #tpu.pipeline_mode<synchronous>, transform_indices = @transform_5, window_bounds = array<i64: 32, 1>}, {pipeline_mode = #tpu.pipeline_mode<synchronous>, transform_indices = @transform_6, window_bounds = array<i64: 4, 32>}, {pipeline_mode = #tpu.pipeline_mode<synchronous>, transform_indices = @transform_7, window_bounds = array<i64: 4, 1>}, {transform_indices = @transform_8, window_bounds = array<i64: 8, 256>}]} {
    %c0 = arith.constant 0 : index
    %c0_0 = arith.constant 0 : index
    %0 = vector.load %arg1[%c0, %c0_0] : memref<4x256xf32, #tpu.memory_space<vmem>>, vector<4x256xf32>
    %c0_1 = arith.constant 0 : index
    %c0_2 = arith.constant 0 : index
    %1 = vector.load %arg3[%c0_1, %c0_2] : memref<32x4xf32, #tpu.memory_space<vmem>>, vector<32x4xf32>
    %cst = arith.constant dense<0.000000e+00> : vector<32x256xf32>
    %2 = tpu.matmul %1, %0, %cst {dimension_numbers = #tpu.dot_dimension_numbers<[1], [0], [0], [1], [0, 0, 1, 1], [], []>} : vector<32x4xf32>, vector<4x256xf32>, vector<32x256xf32> -> vector<32x256xf32>
    %c0_3 = arith.constant 0 : index
    %c0_4 = arith.constant 0 : index
    %3 = vector.load %arg4[%c0_3, %c0_4] : memref<32x1xf32, #tpu.memory_space<vmem>>, vector<32x1xf32>
    %4 = vector.broadcast %3 : vector<32x1xf32> to vector<32x256xf32>
    %5 = arith.addf %2, %4 : vector<32x256xf32>
    %cst_5 = arith.constant 0.000000e+00 : f32
    %6 = vector.broadcast %cst_5 : f32 to vector<32x256xf32>
    %7 = arith.cmpf oge, %5, %6 : vector<32x256xf32>
    %cst_6 = arith.constant 3.000000e-01 : f32
    %8 = vector.broadcast %cst_6 : f32 to vector<32x256xf32>
    %9 = arith.mulf %8, %5 : vector<32x256xf32>
    %10 = arith.select %7, %5, %9 : vector<32x256xi1>, vector<32x256xf32>
    %c17_i32 = arith.constant 17 : i32
    %11 = tpu.dynamic_rotate %10 by %c17_i32 dim 1 : vector<32x256xf32>, i32 -> vector<32x256xf32>
    %c0_7 = arith.constant 0 : index
    %c0_8 = arith.constant 0 : index
    %12 = vector.load %arg2[%c0_7, %c0_8] : memref<9x256xf32, #tpu.memory_space<vmem>>, vector<1x256xf32>
    %13 = vector.broadcast %12 : vector<1x256xf32> to vector<32x256xf32>
    %14 = arith.mulf %11, %13 : vector<32x256xf32>
    %c0_9 = arith.constant 0 : index
    %c0_10 = arith.constant 0 : index
    %c0_11 = arith.constant 0 : index
    %15 = vector.load %arg5[%c0_9, %c0_10, %c0_11] : memref<9x32x32xbf16, #tpu.memory_space<vmem>>, vector<1x32x32xbf16>
    %16 = vector.shape_cast %15 : vector<1x32x32xbf16> to vector<32x32xbf16>
    %17 = arith.truncf %14 : vector<32x256xf32> to vector<32x256xbf16>
    %cst_12 = arith.constant dense<0.000000e+00> : vector<32x256xf32>
    %18 = tpu.matmul %16, %17, %cst_12 {dimension_numbers = #tpu.dot_dimension_numbers<[1], [0], [0], [1], [0, 0, 1, 1], [], []>} : vector<32x32xbf16>, vector<32x256xbf16>, vector<32x256xf32> -> vector<32x256xf32>
    %c16_i32 = arith.constant 16 : i32
    %19 = tpu.dynamic_rotate %10 by %c16_i32 dim 1 : vector<32x256xf32>, i32 -> vector<32x256xf32>
    %c1 = arith.constant 1 : index
    %c0_13 = arith.constant 0 : index
    %20 = vector.load %arg2[%c1, %c0_13] : memref<9x256xf32, #tpu.memory_space<vmem>>, vector<1x256xf32>
    %21 = vector.broadcast %20 : vector<1x256xf32> to vector<32x256xf32>
    %22 = arith.mulf %19, %21 : vector<32x256xf32>
    %c1_14 = arith.constant 1 : index
    %c0_15 = arith.constant 0 : index
    %c0_16 = arith.constant 0 : index
    %23 = vector.load %arg5[%c1_14, %c0_15, %c0_16] : memref<9x32x32xbf16, #tpu.memory_space<vmem>>, vector<1x32x32xbf16>
    %24 = vector.shape_cast %23 : vector<1x32x32xbf16> to vector<32x32xbf16>
    %25 = arith.truncf %22 : vector<32x256xf32> to vector<32x256xbf16>
    %cst_17 = arith.constant dense<0.000000e+00> : vector<32x256xf32>
    %26 = tpu.matmul %24, %25, %cst_17 {dimension_numbers = #tpu.dot_dimension_numbers<[1], [0], [0], [1], [0, 0, 1, 1], [], []>} : vector<32x32xbf16>, vector<32x256xbf16>, vector<32x256xf32> -> vector<32x256xf32>
    %27 = arith.addf %18, %26 : vector<32x256xf32>
    %c15_i32 = arith.constant 15 : i32
    %28 = tpu.dynamic_rotate %10 by %c15_i32 dim 1 : vector<32x256xf32>, i32 -> vector<32x256xf32>
    %c2 = arith.constant 2 : index
    %c0_18 = arith.constant 0 : index
    %29 = vector.load %arg2[%c2, %c0_18] : memref<9x256xf32, #tpu.memory_space<vmem>>, vector<1x256xf32>
    %30 = vector.broadcast %29 : vector<1x256xf32> to vector<32x256xf32>
    %31 = arith.mulf %28, %30 : vector<32x256xf32>
    %c2_19 = arith.constant 2 : index
    %c0_20 = arith.constant 0 : index
    %c0_21 = arith.constant 0 : index
    %32 = vector.load %arg5[%c2_19, %c0_20, %c0_21] : memref<9x32x32xbf16, #tpu.memory_space<vmem>>, vector<1x32x32xbf16>
    %33 = vector.shape_cast %32 : vector<1x32x32xbf16> to vector<32x32xbf16>
    %34 = arith.truncf %31 : vector<32x256xf32> to vector<32x256xbf16>
    %cst_22 = arith.constant dense<0.000000e+00> : vector<32x256xf32>
    %35 = tpu.matmul %33, %34, %cst_22 {dimension_numbers = #tpu.dot_dimension_numbers<[1], [0], [0], [1], [0, 0, 1, 1], [], []>} : vector<32x32xbf16>, vector<32x256xbf16>, vector<32x256xf32> -> vector<32x256xf32>
    %36 = arith.addf %27, %35 : vector<32x256xf32>
    %c1_i32 = arith.constant 1 : i32
    %37 = tpu.dynamic_rotate %10 by %c1_i32 dim 1 : vector<32x256xf32>, i32 -> vector<32x256xf32>
    %c3 = arith.constant 3 : index
    %c0_23 = arith.constant 0 : index
    %38 = vector.load %arg2[%c3, %c0_23] : memref<9x256xf32, #tpu.memory_space<vmem>>, vector<1x256xf32>
    %39 = vector.broadcast %38 : vector<1x256xf32> to vector<32x256xf32>
    %40 = arith.mulf %37, %39 : vector<32x256xf32>
    %c3_24 = arith.constant 3 : index
    %c0_25 = arith.constant 0 : index
    %c0_26 = arith.constant 0 : index
    %41 = vector.load %arg5[%c3_24, %c0_25, %c0_26] : memref<9x32x32xbf16, #tpu.memory_space<vmem>>, vector<1x32x32xbf16>
    %42 = vector.shape_cast %41 : vector<1x32x32xbf16> to vector<32x32xbf16>
    %43 = arith.truncf %40 : vector<32x256xf32> to vector<32x256xbf16>
    %cst_27 = arith.constant dense<0.000000e+00> : vector<32x256xf32>
    %44 = tpu.matmul %42, %43, %cst_27 {dimension_numbers = #tpu.dot_dimension_numbers<[1], [0], [0], [1], [0, 0, 1, 1], [], []>} : vector<32x32xbf16>, vector<32x256xbf16>, vector<32x256xf32> -> vector<32x256xf32>
    %45 = arith.addf %36, %44 : vector<32x256xf32>
    %c4 = arith.constant 4 : index
    %c0_28 = arith.constant 0 : index
    %c0_29 = arith.constant 0 : index
    %46 = vector.load %arg5[%c4, %c0_28, %c0_29] : memref<9x32x32xbf16, #tpu.memory_space<vmem>>, vector<1x32x32xbf16>
    %47 = vector.shape_cast %46 : vector<1x32x32xbf16> to vector<32x32xbf16>
    %48 = arith.truncf %10 : vector<32x256xf32> to vector<32x256xbf16>
    %cst_30 = arith.constant dense<0.000000e+00> : vector<32x256xf32>
    %49 = tpu.matmul %47, %48, %cst_30 {dimension_numbers = #tpu.dot_dimension_numbers<[1], [0], [0], [1], [0, 0, 1, 1], [], []>} : vector<32x32xbf16>, vector<32x256xbf16>, vector<32x256xf32> -> vector<32x256xf32>
    %50 = arith.addf %45, %49 : vector<32x256xf32>
    %c255_i32 = arith.constant 255 : i32
    %51 = tpu.dynamic_rotate %10 by %c255_i32 dim 1 : vector<32x256xf32>, i32 -> vector<32x256xf32>
    %c5 = arith.constant 5 : index
    %c0_31 = arith.constant 0 : index
    %52 = vector.load %arg2[%c5, %c0_31] : memref<9x256xf32, #tpu.memory_space<vmem>>, vector<1x256xf32>
    %53 = vector.broadcast %52 : vector<1x256xf32> to vector<32x256xf32>
    %54 = arith.mulf %51, %53 : vector<32x256xf32>
    %c5_32 = arith.constant 5 : index
    %c0_33 = arith.constant 0 : index
    %c0_34 = arith.constant 0 : index
    %55 = vector.load %arg5[%c5_32, %c0_33, %c0_34] : memref<9x32x32xbf16, #tpu.memory_space<vmem>>, vector<1x32x32xbf16>
    %56 = vector.shape_cast %55 : vector<1x32x32xbf16> to vector<32x32xbf16>
    %57 = arith.truncf %54 : vector<32x256xf32> to vector<32x256xbf16>
    %cst_35 = arith.constant dense<0.000000e+00> : vector<32x256xf32>
    %58 = tpu.matmul %56, %57, %cst_35 {dimension_numbers = #tpu.dot_dimension_numbers<[1], [0], [0], [1], [0, 0, 1, 1], [], []>} : vector<32x32xbf16>, vector<32x256xbf16>, vector<32x256xf32> -> vector<32x256xf32>
    %59 = arith.addf %50, %58 : vector<32x256xf32>
    %c241_i32 = arith.constant 241 : i32
    %60 = tpu.dynamic_rotate %10 by %c241_i32 dim 1 : vector<32x256xf32>, i32 -> vector<32x256xf32>
    %c6 = arith.constant 6 : index
    %c0_36 = arith.constant 0 : index
    %61 = vector.load %arg2[%c6, %c0_36] : memref<9x256xf32, #tpu.memory_space<vmem>>, vector<1x256xf32>
    %62 = vector.broadcast %61 : vector<1x256xf32> to vector<32x256xf32>
    %63 = arith.mulf %60, %62 : vector<32x256xf32>
    %c6_37 = arith.constant 6 : index
    %c0_38 = arith.constant 0 : index
    %c0_39 = arith.constant 0 : index
    %64 = vector.load %arg5[%c6_37, %c0_38, %c0_39] : memref<9x32x32xbf16, #tpu.memory_space<vmem>>, vector<1x32x32xbf16>
    %65 = vector.shape_cast %64 : vector<1x32x32xbf16> to vector<32x32xbf16>
    %66 = arith.truncf %63 : vector<32x256xf32> to vector<32x256xbf16>
    %cst_40 = arith.constant dense<0.000000e+00> : vector<32x256xf32>
    %67 = tpu.matmul %65, %66, %cst_40 {dimension_numbers = #tpu.dot_dimension_numbers<[1], [0], [0], [1], [0, 0, 1, 1], [], []>} : vector<32x32xbf16>, vector<32x256xbf16>, vector<32x256xf32> -> vector<32x256xf32>
    %68 = arith.addf %59, %67 : vector<32x256xf32>
    %c240_i32 = arith.constant 240 : i32
    %69 = tpu.dynamic_rotate %10 by %c240_i32 dim 1 : vector<32x256xf32>, i32 -> vector<32x256xf32>
    %c7 = arith.constant 7 : index
    %c0_41 = arith.constant 0 : index
    %70 = vector.load %arg2[%c7, %c0_41] : memref<9x256xf32, #tpu.memory_space<vmem>>, vector<1x256xf32>
    %71 = vector.broadcast %70 : vector<1x256xf32> to vector<32x256xf32>
    %72 = arith.mulf %69, %71 : vector<32x256xf32>
    %c7_42 = arith.constant 7 : index
    %c0_43 = arith.constant 0 : index
    %c0_44 = arith.constant 0 : index
    %73 = vector.load %arg5[%c7_42, %c0_43, %c0_44] : memref<9x32x32xbf16, #tpu.memory_space<vmem>>, vector<1x32x32xbf16>
    %74 = vector.shape_cast %73 : vector<1x32x32xbf16> to vector<32x32xbf16>
    %75 = arith.truncf %72 : vector<32x256xf32> to vector<32x256xbf16>
    %cst_45 = arith.constant dense<0.000000e+00> : vector<32x256xf32>
    %76 = tpu.matmul %74, %75, %cst_45 {dimension_numbers = #tpu.dot_dimension_numbers<[1], [0], [0], [1], [0, 0, 1, 1], [], []>} : vector<32x32xbf16>, vector<32x256xbf16>, vector<32x256xf32> -> vector<32x256xf32>
    %77 = arith.addf %68, %76 : vector<32x256xf32>
    %c239_i32 = arith.constant 239 : i32
    %78 = tpu.dynamic_rotate %10 by %c239_i32 dim 1 : vector<32x256xf32>, i32 -> vector<32x256xf32>
    %c8 = arith.constant 8 : index
    %c0_46 = arith.constant 0 : index
    %79 = vector.load %arg2[%c8, %c0_46] : memref<9x256xf32, #tpu.memory_space<vmem>>, vector<1x256xf32>
    %80 = vector.broadcast %79 : vector<1x256xf32> to vector<32x256xf32>
    %81 = arith.mulf %78, %80 : vector<32x256xf32>
    %c8_47 = arith.constant 8 : index
    %c0_48 = arith.constant 0 : index
    %c0_49 = arith.constant 0 : index
    %82 = vector.load %arg5[%c8_47, %c0_48, %c0_49] : memref<9x32x32xbf16, #tpu.memory_space<vmem>>, vector<1x32x32xbf16>
    %83 = vector.shape_cast %82 : vector<1x32x32xbf16> to vector<32x32xbf16>
    %84 = arith.truncf %81 : vector<32x256xf32> to vector<32x256xbf16>
    %cst_50 = arith.constant dense<0.000000e+00> : vector<32x256xf32>
    %85 = tpu.matmul %83, %84, %cst_50 {dimension_numbers = #tpu.dot_dimension_numbers<[1], [0], [0], [1], [0, 0, 1, 1], [], []>} : vector<32x32xbf16>, vector<32x256xbf16>, vector<32x256xf32> -> vector<32x256xf32>
    %86 = arith.addf %77, %85 : vector<32x256xf32>
    %c0_51 = arith.constant 0 : index
    %c0_52 = arith.constant 0 : index
    %87 = vector.load %arg6[%c0_51, %c0_52] : memref<32x1xf32, #tpu.memory_space<vmem>>, vector<32x1xf32>
    %88 = vector.broadcast %87 : vector<32x1xf32> to vector<32x256xf32>
    %89 = arith.addf %86, %88 : vector<32x256xf32>
    %cst_53 = arith.constant 0.000000e+00 : f32
    %90 = vector.broadcast %cst_53 : f32 to vector<32x256xf32>
    %91 = arith.cmpf oge, %89, %90 : vector<32x256xf32>
    %cst_54 = arith.constant 3.000000e-01 : f32
    %92 = vector.broadcast %cst_54 : f32 to vector<32x256xf32>
    %93 = arith.mulf %92, %89 : vector<32x256xf32>
    %94 = arith.select %91, %89, %93 : vector<32x256xi1>, vector<32x256xf32>
    %c0_55 = arith.constant 0 : index
    %c0_56 = arith.constant 0 : index
    %95 = vector.load %arg7[%c0_55, %c0_56] : memref<4x32xf32, #tpu.memory_space<vmem>>, vector<4x32xf32>
    %cst_57 = arith.constant dense<0.000000e+00> : vector<4x256xf32>
    %96 = tpu.matmul %95, %94, %cst_57 {dimension_numbers = #tpu.dot_dimension_numbers<[1], [0], [0], [1], [0, 0, 1, 1], [], []>} : vector<4x32xf32>, vector<32x256xf32>, vector<4x256xf32> -> vector<4x256xf32>
    %c0_58 = arith.constant 0 : index
    %c0_59 = arith.constant 0 : index
    %97 = vector.load %arg8[%c0_58, %c0_59] : memref<4x1xf32, #tpu.memory_space<vmem>>, vector<4x1xf32>
    %98 = vector.broadcast %97 : vector<4x1xf32> to vector<4x256xf32>
    %99 = arith.addf %96, %98 : vector<4x256xf32>
    %c0_60 = arith.constant 0 : index
    %c0_61 = arith.constant 0 : index
    %100 = vector.load %arg9[%c0_60, %c0_61] : memref<8x256xf32, #tpu.memory_space<vmem>>, vector<4x256xf32>
    tpu.vector_store %arg9[%c0_60, %c0_61], %0 {strides = array<i32>} : memref<8x256xf32, #tpu.memory_space<vmem>>, vector<4x256xf32>,
    %c4_62 = arith.constant 4 : index
    %c0_63 = arith.constant 0 : index
    %101 = vector.load %arg9[%c4_62, %c0_63] : memref<8x256xf32, #tpu.memory_space<vmem>>, vector<4x256xf32>
    tpu.vector_store %arg9[%c4_62, %c0_63], %99 {strides = array<i32>} : memref<8x256xf32, #tpu.memory_space<vmem>>, vector<4x256xf32>,
    return
  }
  func.func @transform_0(%arg0: i32) -> (i32, i32) {
    %c0_i32 = arith.constant 0 : i32
    %c0_i32_0 = arith.constant 0 : i32
    return %c0_i32, %arg0 : i32, i32
  }
  func.func @transform_1(%arg0: i32) -> (i32, i32) {
    %c0_i32 = arith.constant 0 : i32
    %c0_i32_0 = arith.constant 0 : i32
    %c0_i32_1 = arith.constant 0 : i32
    return %c0_i32, %c0_i32_0 : i32, i32
  }
  func.func @transform_2(%arg0: i32) -> (i32, i32) {
    %c0_i32 = arith.constant 0 : i32
    %c0_i32_0 = arith.constant 0 : i32
    %c0_i32_1 = arith.constant 0 : i32
    return %c0_i32, %c0_i32_0 : i32, i32
  }
  func.func @transform_3(%arg0: i32) -> (i32, i32) {
    %c0_i32 = arith.constant 0 : i32
    %c0_i32_0 = arith.constant 0 : i32
    %c0_i32_1 = arith.constant 0 : i32
    return %c0_i32, %c0_i32_0 : i32, i32
  }
  func.func @transform_4(%arg0: i32) -> (i32, i32, i32) {
    %c0_i32 = arith.constant 0 : i32
    %c0_i32_0 = arith.constant 0 : i32
    %c0_i32_1 = arith.constant 0 : i32
    %c0_i32_2 = arith.constant 0 : i32
    return %c0_i32, %c0_i32_0, %c0_i32_1 : i32, i32, i32
  }
  func.func @transform_5(%arg0: i32) -> (i32, i32) {
    %c0_i32 = arith.constant 0 : i32
    %c0_i32_0 = arith.constant 0 : i32
    %c0_i32_1 = arith.constant 0 : i32
    return %c0_i32, %c0_i32_0 : i32, i32
  }
  func.func @transform_6(%arg0: i32) -> (i32, i32) {
    %c0_i32 = arith.constant 0 : i32
    %c0_i32_0 = arith.constant 0 : i32
    %c0_i32_1 = arith.constant 0 : i32
    return %c0_i32, %c0_i32_0 : i32, i32
  }
  func.func @transform_7(%arg0: i32) -> (i32, i32) {
    %c0_i32 = arith.constant 0 : i32
    %c0_i32_0 = arith.constant 0 : i32
    %c0_i32_1 = arith.constant 0 : i32
    return %c0_i32, %c0_i32_0 : i32, i32
  }
  func.func @transform_8(%arg0: i32) -> (i32, i32) {
    %c0_i32 = arith.constant 0 : i32
    %c0_i32_0 = arith.constant 0 : i32
    return %c0_i32, %arg0 : i32, i32
  }
}

</mosaic_0001>

<llo_original>
// kernel: tpu_custom_call.1
$region0: #{tpu_custom_call.1}
  #allocation0 [shape = 'u32[]', space=smem, size = 0x4, offset = 0x4, fixed_abs, tag = 'smem constant byte address 0x4 - core index']
  #allocation1 [shape = 'u32[144,128]{1,0:T(1,128)}', space=vmem, size = 0x12000, scoped, tag = 'internal scratch']
  %s0 = inlined_call_operand.vmem [shape: f32[4,512], index: 0, kind: input, shape index: {}]
  %s1 = inlined_call_operand.vmem [shape: f32[9,256], index: 1, kind: input, shape index: {}]
  %s2 = inlined_call_operand.vmem [shape: f32[32,4], index: 2, kind: input, shape index: {}]
  %s3 = inlined_call_operand.vmem [shape: f32[32,1], index: 3, kind: input, shape index: {}]
  %s4 = inlined_call_operand.hbm [shape: bf16[9,32,32], index: 4, kind: input, shape index: {}]
  %s5 = inlined_call_operand.vmem [shape: f32[32,1], index: 5, kind: input, shape index: {}]
  %s6 = inlined_call_operand.vmem [shape: f32[4,32], index: 6, kind: input, shape index: {}]
  %s7 = inlined_call_operand.vmem [shape: f32[4,1], index: 7, kind: input, shape index: {}]
  %s8 = inlined_call_operand.hbm [shape: f32[8,512], index: 8, kind: output, shape index: {}]
  %s9 = sld [smem:[#allocation0]]
  $region69: #{tpu_custom_call.1} parent=0
    _
  %s11 = ssub.s32 1, %s9
  %s12 = scalar_select 0, %s11, %s9
  $region1: #{tpu_custom_call.1} parent=0
    #allocation2 [shape = 'u8[73728]{0}', space=vmem, size = 0x12000, scoped, tag = 'input window, operand 4, single buffered']
    #allocation3 [shape = 's32[2]{0}', space=sflag, size = 0x8, scoped, tag = 'scoped memory for tpu_custom_call.1']
    #allocation4 [shape = 's32[2]{0}', space=sflag, size = 0x8, scoped, tag = 'scoped memory for tpu_custom_call.1']
    #allocation5 [shape = 'u8[16384]{0}', space=vmem, size = 0x4000, scoped, tag = 'output window, operand 0']
    %13 = vsyncpa [#allocation3], 0
    %14 = vsyncpa [#allocation4], 0
    %s15 = scalar_lea.sflag [#allocation4], 1
    %16 = vsyncpa %s15, 0
    loop: start=0, step=1, limit=4
    $region2: #{tpu_custom_call.1} parent=1 // loop_pre_header
      _
    $region3: #{tpu_custom_call.1} parent=1 // loop_header
      %s18 = sphi 0, %s22
      %p19 = scmp.ge.s32.totalorder %s18, 4
      %s28 = sphi 0, %s30
      %s31 = sphi 0, %s28
      %s32 = sphi 0, %s31
      %s48 = sphi 0, %s32
      %s52 = sphi 0, %s52
      %s54 = sphi 0, %s52
      %s55 = sphi 0, %s54
      %s69 = sphi 0, %s55
      %s73 = sphi 0, %s73
      %s75 = sphi 0, %s73
      %s76 = sphi 0, %s75
      %s90 = sphi 0, %s76
      %s94 = sphi 0, %s94
      %s96 = sphi 0, %s94
      %s97 = sphi 0, %s96
      %s111 = sphi 0, %s97
      %s115 = sphi 0, %s115
      %s117 = sphi 0, %s115
      %s118 = sphi 0, %s117
      %s132 = sphi 0, %s118
      %s136 = sphi 0, %s136
      %s138 = sphi 0, %s136
      %s139 = sphi 0, %s138
      %s153 = sphi 0, %s139
      %s157 = sphi 0, %s157
      %s159 = sphi 0, %s157
      %s160 = sphi 0, %s159
      %s174 = sphi 0, %s160
      %s178 = sphi 0, %s178
      %s180 = sphi 0, %s178
      %s181 = sphi 0, %s180
      %s195 = sphi 0, %s181
      %s201 = sphi 0, %s203
      %s204 = sphi 0, %s201
      %s205 = sphi 0, %s204
      %s221 = sphi 0, %s205
    $region4: #{tpu_custom_call.1} parent=1 // loop_header_branch
      %21 = sbr.rel (%p19) target = $region8
    $region5: #{tpu_custom_call.1} parent=1 // loop_body
      %s23 = ssub.s32 %s18, 1
      %s24 = ssub.s32 %s18, 2
      %s25 = sadd.s32 %s18, 1
      %s26 = ssub.s32 %s18, %s25
      %p27 = scmp.eq.s32.totalorder %s26, 0
      %s29 = sadd.s32 %s28, 1
      %s30 = scalar_select %p27, %s28, %s29
      %p33 = pneg %p27
      %p34 = scmp.eq.s32.totalorder %s18, 1
      %p35 = por %p33, %p34
      %p36 = scmp.ne.s32.totalorder %s28, %s31
      %p37 = scmp.eq.s32.totalorder %s18, 0
      %p38 = por %p36, %p37
      %p39 = scmp.ne.s32.totalorder %s28, %s31
      %p40 = scmp.eq.s32.totalorder %s23, 1
      %p41 = por %p39, %p40
      %p42 = scmp.ne.s32.totalorder %s31, %s32
      %p43 = scmp.eq.s32.totalorder %s23, 0
      %p44 = por %p42, %p43
      %p45 = scmp.ne.s32.totalorder %s31, %s32
      %p46 = scmp.eq.s32.totalorder %s24, 1
      %p47 = por %p45, %p46
      %p49 = scmp.ne.s32.totalorder %s32, %s48
      %p50 = scmp.eq.s32.totalorder %s24, 0
      %p51 = por %p49, %p50
      %s53 = sadd.s32 %s52, 1
      %p56 = scmp.eq.s32.totalorder %s18, 1
      %p57 = scmp.ne.s32.totalorder %s52, %s54
      %p58 = scmp.eq.s32.totalorder %s18, 0
      %p59 = por %p57, %p58
      %p60 = scmp.ne.s32.totalorder %s52, %s54
      %p61 = scmp.eq.s32.totalorder %s23, 1
      %p62 = por %p60, %p61
      %p63 = scmp.ne.s32.totalorder %s54, %s55
      %p64 = scmp.eq.s32.totalorder %s23, 0
      %p65 = por %p63, %p64
      %p66 = scmp.ne.s32.totalorder %s54, %s55
      %p67 = scmp.eq.s32.totalorder %s24, 1
      %p68 = por %p66, %p67
      %p70 = scmp.ne.s32.totalorder %s55, %s69
      %p71 = scmp.eq.s32.totalorder %s24, 0
      %p72 = por %p70, %p71
      %s74 = sadd.s32 %s73, 1
      %p77 = scmp.eq.s32.totalorder %s18, 1
      %p78 = scmp.ne.s32.totalorder %s73, %s75
      %p79 = scmp.eq.s32.totalorder %s18, 0
      %p80 = por %p78, %p79
      %p81 = scmp.ne.s32.totalorder %s73, %s75
      %p82 = scmp.eq.s32.totalorder %s23, 1
      %p83 = por %p81, %p82
      %p84 = scmp.ne.s32.totalorder %s75, %s76
      %p85 = scmp.eq.s32.totalorder %s23, 0
      %p86 = por %p84, %p85
      %p87 = scmp.ne.s32.totalorder %s75, %s76
      %p88 = scmp.eq.s32.totalorder %s24, 1
      %p89 = por %p87, %p88
      %p91 = scmp.ne.s32.totalorder %s76, %s90
      %p92 = scmp.eq.s32.totalorder %s24, 0
      %p93 = por %p91, %p92
      %s95 = sadd.s32 %s94, 1
      %p98 = scmp.eq.s32.totalorder %s18, 1
      %p99 = scmp.ne.s32.totalorder %s94, %s96
      %p100 = scmp.eq.s32.totalorder %s18, 0
      %p101 = por %p99, %p100
      %p102 = scmp.ne.s32.totalorder %s94, %s96
      %p103 = scmp.eq.s32.totalorder %s23, 1
      %p104 = por %p102, %p103
      %p105 = scmp.ne.s32.totalorder %s96, %s97
      %p106 = scmp.eq.s32.totalorder %s23, 0
      %p107 = por %p105, %p106
      %p108 = scmp.ne.s32.totalorder %s96, %s97
      %p109 = scmp.eq.s32.totalorder %s24, 1
      %p110 = por %p108, %p109
      %p112 = scmp.ne.s32.totalorder %s97, %s111
      %p113 = scmp.eq.s32.totalorder %s24, 0
      %p114 = por %p112, %p113
      %s116 = sadd.s32 %s115, 1
      %p119 = scmp.eq.s32.totalorder %s18, 1
      %p120 = scmp.ne.s32.totalorder %s115, %s117
      %p121 = scmp.eq.s32.totalorder %s18, 0
      %p122 = por %p120, %p121
      %p123 = scmp.ne.s32.totalorder %s115, %s117
      %p124 = scmp.eq.s32.totalorder %s23, 1
      %p125 = por %p123, %p124
      %p126 = scmp.ne.s32.totalorder %s117, %s118
      %p127 = scmp.eq.s32.totalorder %s23, 0
      %p128 = por %p126, %p127
      %p129 = scmp.ne.s32.totalorder %s117, %s118
      %p130 = scmp.eq.s32.totalorder %s24, 1
      %p131 = por %p129, %p130
      %p133 = scmp.ne.s32.totalorder %s118, %s132
      %p134 = scmp.eq.s32.totalorder %s24, 0
      %p135 = por %p133, %p134
      %s137 = sadd.s32 %s136, 1
      %p140 = scmp.eq.s32.totalorder %s18, 1
      %p141 = scmp.ne.s32.totalorder %s136, %s138
      %p142 = scmp.eq.s32.totalorder %s18, 0
      %p143 = por %p141, %p142
      %p144 = scmp.ne.s32.totalorder %s136, %s138
      %p145 = scmp.eq.s32.totalorder %s23, 1
      %p146 = por %p144, %p145
      %p147 = scmp.ne.s32.totalorder %s138, %s139
      %p148 = scmp.eq.s32.totalorder %s23, 0
      %p149 = por %p147, %p148
      %p150 = scmp.ne.s32.totalorder %s138, %s139
      %p151 = scmp.eq.s32.totalorder %s24, 1
      %p152 = por %p150, %p151
      %p154 = scmp.ne.s32.totalorder %s139, %s153
      %p155 = scmp.eq.s32.totalorder %s24, 0
      %p156 = por %p154, %p155
      %s158 = sadd.s32 %s157, 1
      %p161 = scmp.eq.s32.totalorder %s18, 1
      %p162 = scmp.ne.s32.totalorder %s157, %s159
      %p163 = scmp.eq.s32.totalorder %s18, 0
      %p164 = por %p162, %p163
      %p165 = scmp.ne.s32.totalorder %s157, %s159
      %p166 = scmp.eq.s32.totalorder %s23, 1
      %p167 = por %p165, %p166
      %p168 = scmp.ne.s32.totalorder %s159, %s160
      %p169 = scmp.eq.s32.totalorder %s23, 0
      %p170 = por %p168, %p169
      %p171 = scmp.ne.s32.totalorder %s159, %s160
      %p172 = scmp.eq.s32.totalorder %s24, 1
      %p173 = por %p171, %p172
      %p175 = scmp.ne.s32.totalorder %s160, %s174
      %p176 = scmp.eq.s32.totalorder %s24, 0
      %p177 = por %p175, %p176
      %s179 = sadd.s32 %s178, 1
      %p182 = scmp.eq.s32.totalorder %s18, 1
      %p183 = scmp.ne.s32.totalorder %s178, %s180
      %p184 = scmp.eq.s32.totalorder %s18, 0
      %p185 = por %p183, %p184
      %p186 = scmp.ne.s32.totalorder %s178, %s180
      %p187 = scmp.eq.s32.totalorder %s23, 1
      %p188 = por %p186, %p187
      %p189 = scmp.ne.s32.totalorder %s180, %s181
      %p190 = scmp.eq.s32.totalorder %s23, 0
      %p191 = por %p189, %p190
      %p192 = scmp.ne.s32.totalorder %s180, %s181
      %p193 = scmp.eq.s32.totalorder %s24, 1
      %p194 = por %p192, %p193
      %p196 = scmp.ne.s32.totalorder %s181, %s195
      %p197 = scmp.eq.s32.totalorder %s24, 0
      %p198 = por %p196, %p197
      %s199 = ssub.s32 %s18, %s25
      %p200 = scmp.eq.s32.totalorder %s199, 0
      %s202 = sadd.s32 %s201, 1
      %s203 = scalar_select %p200, %s201, %s202
      %p206 = pneg %p200
      %p207 = scmp.eq.s32.totalorder %s18, 1
      %p208 = por %p206, %p207
      %p209 = scmp.ne.s32.totalorder %s201, %s204
      %p210 = scmp.eq.s32.totalorder %s18, 0
      %p211 = por %p209, %p210
      %p212 = scmp.ne.s32.totalorder %s201, %s204
      %p213 = scmp.eq.s32.totalorder %s23, 1
      %p214 = por %p212, %p213
      %p215 = scmp.ne.s32.totalorder %s204, %s205
      %p216 = scmp.eq.s32.totalorder %s23, 0
      %p217 = por %p215, %p216
      %p218 = scmp.ne.s32.totalorder %s204, %s205
      %p219 = scmp.eq.s32.totalorder %s24, 1
      %p220 = por %p218, %p219
      %p222 = scmp.ne.s32.totalorder %s205, %s221
      %p223 = scmp.eq.s32.totalorder %s24, 0
      %p224 = por %p222, %p223
      %p225 = scmp.le.s32.totalorder 1, %s18
      %p226 = scmp.lt.s32.totalorder %s18, 3
      %p227 = pnand %p225, %p226
      %p228 = pneg %p227
      // Predicated region
      $region9: #{tpu_custom_call.1} parent=5 // pred_check
        _
      $region10: #{tpu_custom_call.1} parent=5 // pred_check_branch
        %230 = sbr.rel (%p227) target = $region12
      $region11: #{tpu_custom_call.1} parent=5 // pred_region
        %s231 = ssub.s32 %s18, 1
        // Predicated region
        $region13: #{tpu_custom_call.1} parent=11 // pred_check
          %p232 = pneg %p65
        $region14: #{tpu_custom_call.1} parent=11 // pred_check_branch
          %234 = sbr.rel (%p232) target = $region16
        $region15: #{tpu_custom_call.1} parent=11 // pred_region
          _
        $region16: #{tpu_custom_call.1} parent=11 // pred_fallthru
          _
        // Predicated region
        $region17: #{tpu_custom_call.1} parent=11 // pred_check
          %p235 = pneg %p86
        $region18: #{tpu_custom_call.1} parent=11 // pred_check_branch
          %237 = sbr.rel (%p235) target = $region20
        $region19: #{tpu_custom_call.1} parent=11 // pred_region
          _
        $region20: #{tpu_custom_call.1} parent=11 // pred_fallthru
          _
        // Predicated region
        $region21: #{tpu_custom_call.1} parent=11 // pred_check
          %p238 = pneg %p107
        $region22: #{tpu_custom_call.1} parent=11 // pred_check_branch
          %240 = sbr.rel (%p238) target = $region24
        $region23: #{tpu_custom_call.1} parent=11 // pred_region
          _
        $region24: #{tpu_custom_call.1} parent=11 // pred_fallthru
          _
        // Predicated region
        $region25: #{tpu_custom_call.1} parent=11 // pred_check
          %p241 = pneg %p128
        $region26: #{tpu_custom_call.1} parent=11 // pred_check_branch
          %243 = sbr.rel (%p241) target = $region28
        $region27: #{tpu_custom_call.1} parent=11 // pred_region
          %s245 = ssub.s32 2304, 2304
          %246 = vsyncadd [#allocation3], %s245
          %s247 = sshll.u32 [#allocation2], 4
          %s248 = int_to_ptr.vmem [resolvable:$true] %s247
          %253 = dma.hbm_to_vmem [thread:$0]  %s4, 2304, %s248, [#allocation3], 64, 64, 4
        $region28: #{tpu_custom_call.1} parent=11 // pred_fallthru
          _
        // Predicated region
        $region29: #{tpu_custom_call.1} parent=11 // pred_check
          %p254 = pneg %p149
        $region30: #{tpu_custom_call.1} parent=11 // pred_check_branch
          %256 = sbr.rel (%p254) target = $region32
        $region31: #{tpu_custom_call.1} parent=11 // pred_region
          _
        $region32: #{tpu_custom_call.1} parent=11 // pred_fallthru
          _
        // Predicated region
        $region33: #{tpu_custom_call.1} parent=11 // pred_check
          %p257 = pneg %p170
        $region34: #{tpu_custom_call.1} parent=11 // pred_check_branch
          %259 = sbr.rel (%p257) target = $region36
        $region35: #{tpu_custom_call.1} parent=11 // pred_region
          _
        $region36: #{tpu_custom_call.1} parent=11 // pred_fallthru
          _
        // Predicated region
        $region37: #{tpu_custom_call.1} parent=11 // pred_check
          %p260 = pneg %p191
        $region38: #{tpu_custom_call.1} parent=11 // pred_check_branch
          %262 = sbr.rel (%p260) target = $region40
        $region39: #{tpu_custom_call.1} parent=11 // pred_region
          _
        $region40: #{tpu_custom_call.1} parent=11 // pred_fallthru
          _
      $region12: #{tpu_custom_call.1} parent=5 // pred_fallthru
        _
      %p263 = scmp.lt.s32.totalorder %s18, 2
      // Predicated region
      $region41: #{tpu_custom_call.1} parent=5 // pred_check
        %p264 = pneg %p263
      $region42: #{tpu_custom_call.1} parent=5 // pred_check_branch
        %266 = sbr.rel (%p264) target = $region44
      $region43: #{tpu_custom_call.1} parent=5 // pred_region
        // Predicated region
        $region45: #{tpu_custom_call.1} parent=43 // pred_check
          %p267 = pneg %p38
        $region46: #{tpu_custom_call.1} parent=43 // pred_check_branch
          %269 = sbr.rel (%p267) target = $region48
        $region47: #{tpu_custom_call.1} parent=43 // pred_region
          %s270 = smul.u32 2, %s18
          %p271 = scmp.lt.s32.totalorder %s270, 3
          %s272 = scalar_select %p271, %s270, 3
          %s273 = smul.addr %s272, 4
          %s274 = scalar_lea.vmem %s0, %s273
          %s275 = smul.u32 2, %s18
        $region48: #{tpu_custom_call.1} parent=43 // pred_fallthru
          _
      $region44: #{tpu_custom_call.1} parent=5 // pred_fallthru
        _
      %p276 = scmp.le.s32.totalorder 1, %s18
      %p277 = scmp.lt.s32.totalorder %s18, 3
      %p278 = pnand %p276, %p277
      %p279 = pneg %p278
      // Predicated region
      $region49: #{tpu_custom_call.1} parent=5 // pred_check
        _
      $region50: #{tpu_custom_call.1} parent=5 // pred_check_branch
        %281 = sbr.rel (%p278) target = $region52
      $region51: #{tpu_custom_call.1} parent=5 // pred_region
        %s282 = ssub.s32 %s18, 1
        // Predicated region
        $region53: #{tpu_custom_call.1} parent=51 // pred_check
          %p283 = pneg %p128
        $region54: #{tpu_custom_call.1} parent=51 // pred_check_branch
          %285 = sbr.rel (%p283) target = $region56
        $region55: #{tpu_custom_call.1} parent=51 // pred_region
          %286 = dma.done [#allocation3], 2304
        $region56: #{tpu_custom_call.1} parent=51 // pred_fallthru
          _
        %s287 = smul.u32 2, %s23
        %p288 = scmp.lt.s32.totalorder %s287, 3
        %s289 = scalar_select %p288, %s287, 3
        %s290 = smul.addr %s289, 4
        %s291 = scalar_lea.vmem %s0, %s290
        %p292 = pneg %p44
        %p293 = pneg %p41
        %p294 = pneg %p65
        %p295 = pneg %p62
        %p296 = pneg %p86
        %p297 = pneg %p83
        %p298 = pneg %p107
        %p299 = pneg %p104
        %p300 = pneg %p128
        %p301 = pneg %p125
        %p302 = pneg %p149
        %p303 = pneg %p146
        %p304 = pneg %p170
        %p305 = pneg %p167
        %p306 = pneg %p191
        %p307 = pneg %p188
        %p308 = pneg %p217
        %p309 = pneg %p214
        %s310 = sand.u32 %s204, 1
        %s311 = scalar_lea.sflag [#allocation4], %s310
        %s312 = sand.u32 %s204, 1
        %s313 = smul.addr %s312, 16
        %s314 = scalar_lea.vmem [#allocation5], %s313
        %s315 = smul.u32 2, %s23
        %p316 = scmp.lt.s32.totalorder %s315, 3
        %s317 = scalar_select %p316, %s315, 3
        %s318 = smul.addr %s317, 4
        %s319 = scalar_lea.vmem %s0, %s318
        %s320 = smul.u32 2, %s23
        %s321 = smul.u32 2, %s23
        %v323 = vld [vmem:[%s319] sm:$0xff]
        %v324 = vld [vmem:[%s2] sm:$0xff]
        %v325 = vld [vmem:[%s2 + $0x8] sm:$0xff]
        %v326 = vld [vmem:[%s2 + $0x10] sm:$0xff]
        %v327 = vld [vmem:[%s2 + $0x18] sm:$0xff]
        %v328 = vld [vmem:[%s3] sm:$0xff]
        %v329 = vld [vmem:[%s3 + $0x8] sm:$0xff]
        %v330 = vld [vmem:[%s3 + $0x10] sm:$0xff]
        %v331 = vld [vmem:[%s3 + $0x18] sm:$0xff]
        %333 = vset.pattern.permute.xlu0 0
        %334 = vperm.xlu0 %333, %v328
        %v335 = vpop.permute.xlu0 %334
        %338 = vset.pattern.permute.xlu0 0
        %339 = vperm.xlu0 %338, %v329
        %v340 = vpop.permute.xlu0 %339
        %343 = vset.pattern.permute.xlu0 0
        %344 = vperm.xlu0 %343, %v330
        %v345 = vpop.permute.xlu0 %344
        %348 = vset.pattern.permute.xlu0 0
        %349 = vperm.xlu0 %348, %v331
        %v350 = vpop.permute.xlu0 %349
        %v353 = vcombine.high %v323, %v323
        %vm354 = vcmask 31744
        %v356 = vsel %vm354, %v324, 0
        %v359 = vsel %vm354, %v325, 0
        %v362 = vsel %vm354, %v326, 0
        %v365 = vsel %vm354, %v327, 0
        %vm367 = vcmask 1043456
        %v368 = vsel %vm367, %v323, 0
        %v370 = vsel %vm367, %v353, 0
        %372 = vmatprep.subr.mxu0 %v370
        %373 = vmatpush1.msra.mxu0 %v368
        %374 = vmatprep.subr.mxu0 0.0
        %375 = vmatpush1.msra.mxu0 0.0
        %376 = vmatprep.subr.mxu0 0.0
        %377 = vmatpush1.msra.mxu0 0.0
        %378 = vmatprep.subr.mxu0 0.0
        %379 = vmatpush1.msra.mxu0 0.0
        %380 = vmatprep.subr.mxu0 0.0
        %381 = vmatpush1.msra.mxu0 0.0
        %382 = vmatprep.subr.mxu0 0.0
        %383 = vmatpush1.msra.mxu0 0.0
        %384 = vmatprep.subr.mxu0 0.0
        %385 = vmatpush1.msra.mxu0 0.0
        %386 = vmatprep.subr.mxu0 0.0
        %387 = vmatpush1.msra.mxu0 0.0
        %388 = vmatprep.subr.mxu0 0.0
        %389 = vmatpush1.msra.mxu0 0.0
        %390 = vmatprep.subr.mxu0 0.0
        %391 = vmatpush1.msra.mxu0 0.0
        %392 = vmatprep.subr.mxu0 0.0
        %393 = vmatpush1.msra.mxu0 0.0
        %394 = vmatprep.subr.mxu0 0.0
        %395 = vmatpush1.msra.mxu0 0.0
        %396 = vmatprep.subr.mxu0 0.0
        %397 = vmatpush1.msra.mxu0 0.0
        %398 = vmatprep.subr.mxu0 0.0
        %399 = vmatpush1.msra.mxu0 0.0
        %400 = vmatprep.subr.mxu0 0.0
        %401 = vmatpush1.msra.mxu0 0.0
        %402 = vmatprep.subr.mxu0 0.0
        %403 = vmatpush1.msra.mxu0 0.0
        %404 = vmatprep.subr.mxu0 0.0
        %405 = vmatpush1.msra.mxu0 0.0
        %406 = vmatprep.subr.mxu0 0.0
        %407 = vmatpush1.msra.mxu0 0.0
        %408 = vmatprep.subr.mxu0 0.0
        %409 = vmatpush1.msra.mxu0 0.0
        %410 = vmatprep.subr.mxu0 0.0
        %411 = vmatpush1.msra.mxu0 0.0
        %412 = vmatprep.subr.mxu0 0.0
        %413 = vmatpush1.msra.mxu0 0.0
        %414 = vmatprep.subr.mxu0 0.0
        %415 = vmatpush1.msra.mxu0 0.0
        %416 = vmatprep.subr.mxu0 0.0
        %417 = vmatpush1.msra.mxu0 0.0
        %418 = vmatprep.subr.mxu0 0.0
        %419 = vmatpush1.msra.mxu0 0.0
        %420 = vmatprep.subr.mxu0 0.0
        %421 = vmatpush1.msra.mxu0 0.0
        %422 = vmatprep.subr.mxu0 0.0
        %423 = vmatpush1.msra.mxu0 0.0
        %424 = vmatprep.subr.mxu0 0.0
        %425 = vmatpush1.msra.mxu0 0.0
        %426 = vmatprep.subr.mxu0 0.0
        %427 = vmatpush1.msra.mxu0 0.0
        %428 = vmatprep.subr.mxu0 0.0
        %429 = vmatpush1.msra.mxu0 0.0
        %430 = vmatprep.subr.mxu0 0.0
        %431 = vmatpush1.msra.mxu0 0.0
        %432 = vmatprep.subr.mxu0 0.0
        %433 = vmatpush1.msra.mxu0 0.0
        %434 = vmatprep.subr.mxu0 0.0
        %435 = vmatpush1.msra.mxu0 0.0
        %436 = vmatprep.mubr.f32.mxu0 0.0
        %437 = vmatmul.mubr.f32.gmra.mrb[0].mxu0 %v356
        %v438 = vpop.f32.mrb[0].mxu0
        %v439 = vadd.f32 %v335, %v438
        %v440 = vpop.f32.mrb[0].mxu0
        %v441 = vadd.f32 %v335, %v440
        %442 = vmatprep.mubr.f32.mxu0 0.0
        %443 = vmatmul.mubr.f32.gmra.mrb[0].mxu0 %v359
        %v444 = vpop.f32.mrb[0].mxu0
        %v445 = vadd.f32 %v340, %v444
        %v446 = vpop.f32.mrb[0].mxu0
        %v447 = vadd.f32 %v340, %v446
        %448 = vmatprep.mubr.f32.mxu0 0.0
        %449 = vmatmul.mubr.f32.gmra.mrb[0].mxu0 %v362
        %v450 = vpop.f32.mrb[0].mxu0
        %v451 = vadd.f32 %v345, %v450
        %v452 = vpop.f32.mrb[0].mxu0
        %v453 = vadd.f32 %v345, %v452
        %454 = vmatprep.mubr.f32.mxu0 0.0
        %455 = vmatmul.mubr.f32.gmra.mrb[0].mxu0 %v365
        %v456 = vpop.f32.mrb[0].mxu0
        %v457 = vadd.f32 %v350, %v456
        %v458 = vpop.f32.mrb[0].mxu0
        %v459 = vadd.f32 %v350, %v458
        %460 = vdwg.mxu0
        %vm461 = vcmp.ge.f32.partialorder %v439, 0.0
        %vm462 = vcmp.ge.f32.partialorder %v441, 0.0
        %vm463 = vcmp.ge.f32.partialorder %v445, 0.0
        %vm464 = vcmp.ge.f32.partialorder %v447, 0.0
        %vm465 = vcmp.ge.f32.partialorder %v451, 0.0
        %vm466 = vcmp.ge.f32.partialorder %v453, 0.0
        %vm467 = vcmp.ge.f32.partialorder %v457, 0.0
        %vm468 = vcmp.ge.f32.partialorder %v459, 0.0
        %v469 = vmul.f32 %v439, 0.3
        %v470 = vmul.f32 %v441, 0.3
        %v471 = vmul.f32 %v445, 0.3
        %v472 = vmul.f32 %v447, 0.3
        %v473 = vmul.f32 %v451, 0.3
        %v474 = vmul.f32 %v453, 0.3
        %v475 = vmul.f32 %v457, 0.3
        %v476 = vmul.f32 %v459, 0.3
        %v477 = vsel %vm461, %v439, %v469
        %v478 = vsel %vm462, %v441, %v470
        %v479 = vsel %vm463, %v445, %v471
        %v480 = vsel %vm464, %v447, %v472
        %v481 = vsel %vm465, %v451, %v473
        %v482 = vsel %vm466, %v453, %v474
        %v483 = vsel %vm467, %v457, %v475
        %v484 = vsel %vm468, %v459, %v476
        %485 = vrot.lane.b32.xlu0 %v477, 17
        %v486 = vpop.permute.xlu0 %485
        %487 = vrot.lane.b32.xlu0 %v479, 17
        %v488 = vpop.permute.xlu0 %487
        %489 = vrot.lane.b32.xlu0 %v481, 17
        %v490 = vpop.permute.xlu0 %489
        %491 = vrot.lane.b32.xlu0 %v483, 17
        %v492 = vpop.permute.xlu0 %491
        %493 = vrot.lane.b32.xlu0 %v478, 17
        %v494 = vpop.permute.xlu0 %493
        %495 = vrot.lane.b32.xlu0 %v480, 17
        %v496 = vpop.permute.xlu0 %495
        %497 = vrot.lane.b32.xlu0 %v482, 17
        %v498 = vpop.permute.xlu0 %497
        %499 = vrot.lane.b32.xlu0 %v484, 17
        %v500 = vpop.permute.xlu0 %499
        %v501 = vlaneseq
        %v502 = vand.u32 %v501, 127
        %vm503 = vcmp.lt.s32.totalorder %v502, 17
        %v504 = vsel %vm503, %v486, %v494
        %v505 = vsel %vm503, %v488, %v496
        %v506 = vsel %vm503, %v490, %v498
        %v507 = vsel %vm503, %v492, %v500
        %v508 = vsel %vm503, %v494, %v486
        %v509 = vsel %vm503, %v496, %v488
        %v510 = vsel %vm503, %v498, %v490
        %v511 = vsel %vm503, %v500, %v492
        %v512 = vld [vmem:[%s1] ss:$8 sm:$0x3]
        %v514 = vlaneseq
        %v515 = vshrl.u32 %v514, 7
        %v516 = vsub.s32 0, %v515
        %v517 = vrot.slane %v512, %v516
        %v518 = vlaneseq
        %v519 = vshrl.u32 %v518, 7
        %v520 = vsub.s32 1, %v519
        %v521 = vrot.slane %v512, %v520
        %v524 = vmul.f32 %v508, %v517
        %v525 = vmul.f32 %v504, %v521
        %v526 = vmul.f32 %v509, %v517
        %v527 = vmul.f32 %v505, %v521
        %v528 = vmul.f32 %v510, %v517
        %v529 = vmul.f32 %v506, %v521
        %v530 = vmul.f32 %v511, %v517
        %v531 = vmul.f32 %v507, %v521
        %v532 = vld [vmem:[#allocation2] sm:$0xf]
        %v533 = vld [vmem:[#allocation2 + $0x4] sm:$0xf]
        %v534 = vld [vmem:[#allocation2 + $0x8] sm:$0xf]
        %v535 = vld [vmem:[#allocation2 + $0xc] sm:$0xf]
        %v536 = vpack.c.bf16 %v526, %v524
        %v537 = vpack.c.bf16 %v527, %v525
        %v538 = vpack.c.bf16 %v530, %v528
        %v539 = vpack.c.bf16 %v531, %v529
        %540 = vrot.lane.b32.xlu0 %v477, 16
        %v541 = vpop.permute.xlu0 %540
        %542 = vrot.lane.b32.xlu0 %v479, 16
        %v543 = vpop.permute.xlu0 %542
        %544 = vrot.lane.b32.xlu0 %v481, 16
        %v545 = vpop.permute.xlu0 %544
        %546 = vrot.lane.b32.xlu0 %v483, 16
        %v547 = vpop.permute.xlu0 %546
        %548 = vrot.lane.b32.xlu0 %v478, 16
        %v549 = vpop.permute.xlu0 %548
        %550 = vrot.lane.b32.xlu0 %v480, 16
        %v551 = vpop.permute.xlu0 %550
        %552 = vrot.lane.b32.xlu0 %v482, 16
        %v553 = vpop.permute.xlu0 %552
        %554 = vrot.lane.b32.xlu0 %v484, 16
        %v555 = vpop.permute.xlu0 %554
        %vm556 = vcmp.lt.s32.totalorder %v502, 16
        %v557 = vsel %vm556, %v541, %v549
        %v558 = vsel %vm556, %v543, %v551
        %v559 = vsel %vm556, %v545, %v553
        %v560 = vsel %vm556, %v547, %v555
        %v561 = vsel %vm556, %v549, %v541
        %v562 = vsel %vm556, %v551, %v543
        %v563 = vsel %vm556, %v553, %v545
        %v564 = vsel %vm556, %v555, %v547
        %s565 = scalar_lea.vmem %s1, 1
        %v566 = vld [vmem:[%s565] ss:$8 sm:$0x3]
        %v568 = vlaneseq
        %v569 = vshrl.u32 %v568, 7
        %v570 = vsub.s32 0, %v569
        %v571 = vrot.slane %v566, %v570
        %v572 = vlaneseq
        %v573 = vshrl.u32 %v572, 7
        %v574 = vsub.s32 1, %v573
        %v575 = vrot.slane %v566, %v574
        %v578 = vmul.f32 %v561, %v571
        %v579 = vmul.f32 %v557, %v575
        %v580 = vmul.f32 %v562, %v571
        %v581 = vmul.f32 %v558, %v575
        %v582 = vmul.f32 %v563, %v571
        %v583 = vmul.f32 %v559, %v575
        %v584 = vmul.f32 %v564, %v571
        %v585 = vmul.f32 %v560, %v575
        %s586 = scalar_lea.vmem [#allocation2], 16
        %v587 = vld [vmem:[%s586] sm:$0xf]
        %v588 = vld [vmem:[%s586 + $0x4] sm:$0xf]
        %v589 = vld [vmem:[%s586 + $0x8] sm:$0xf]
        %v590 = vld [vmem:[%s586 + $0xc] sm:$0xf]
        %v591 = vpack.c.bf16 %v580, %v578
        %v592 = vpack.c.bf16 %v581, %v579
        %v593 = vpack.c.bf16 %v584, %v582
        %v594 = vpack.c.bf16 %v585, %v583
        %v599 = vunpack.c.l.b16 %v587
        %v600 = vunpack.c.l.b16 %v588
        %v601 = vunpack.c.l.b16 %v589
        %v602 = vunpack.c.l.b16 %v590
        %v603 = vpack.c.b16 %v600, %v599
        %v604 = vpack.c.b16 %v602, %v601
        %vm605 = vcmask 261120
        %v607 = vsel %vm605, %v603, 0
        %v610 = vsel %vm605, %v604, 0
        %612 = vmatprep.subr.bf16.mxu0 %v592
        %613 = vmatpush1.bf16.msra.mxu0 %v591
        %614 = vmatprep.subr.bf16.mxu0 %v594
        %615 = vmatpush1.bf16.msra.mxu0 %v593
        %616 = vmatprep.subr.bf16.mxu0 0
        %617 = vmatpush1.bf16.msra.mxu0 0
        %618 = vmatprep.subr.bf16.mxu0 0
        %619 = vmatpush1.bf16.msra.mxu0 0
        %620 = vmatprep.subr.bf16.mxu0 0
        %621 = vmatpush1.bf16.msra.mxu0 0
        %622 = vmatprep.subr.bf16.mxu0 0
        %623 = vmatpush1.bf16.msra.mxu0 0
        %624 = vmatprep.subr.bf16.mxu0 0
        %625 = vmatpush1.bf16.msra.mxu0 0
        %626 = vmatprep.subr.bf16.mxu0 0
        %627 = vmatpush1.bf16.msra.mxu0 0
        %628 = vmatprep.subr.bf16.mxu0 0
        %629 = vmatpush1.bf16.msra.mxu0 0
        %630 = vmatprep.subr.bf16.mxu0 0
        %631 = vmatpush1.bf16.msra.mxu0 0
        %632 = vmatprep.subr.bf16.mxu0 0
        %633 = vmatpush1.bf16.msra.mxu0 0
        %634 = vmatprep.subr.bf16.mxu0 0
        %635 = vmatpush1.bf16.msra.mxu0 0
        %636 = vmatprep.subr.bf16.mxu0 0
        %637 = vmatpush1.bf16.msra.mxu0 0
        %638 = vmatprep.subr.bf16.mxu0 0
        %639 = vmatpush1.bf16.msra.mxu0 0
        %640 = vmatprep.subr.bf16.mxu0 0
        %641 = vmatpush1.bf16.msra.mxu0 0
        %642 = vmatprep.subr.bf16.mxu0 0
        %643 = vmatpush1.bf16.msra.mxu0 0
        %644 = vmatprep.mubr.bf16.mxu0 0
        %645 = vmatmul.mubr.bf16.gmra.mrb[0].mxu0 %v607
        %v646 = vpop.f32.mrb[0].mxu0
        %v647 = vadd.f32 0.0, %v646
        %v648 = vpop.f32.mrb[0].mxu0
        %v649 = vadd.f32 0.0, %v648
        %v650 = vpop.f32.mrb[0].mxu0
        %v651 = vadd.f32 0.0, %v650
        %v652 = vpop.f32.mrb[0].mxu0
        %v653 = vadd.f32 0.0, %v652
        %654 = vmatprep.mubr.bf16.mxu0 0
        %655 = vmatmul.mubr.bf16.gmra.mrb[0].mxu0 %v610
        %v656 = vpop.f32.mrb[0].mxu0
        %v657 = vadd.f32 0.0, %v656
        %v658 = vpop.f32.mrb[0].mxu0
        %v659 = vadd.f32 0.0, %v658
        %v660 = vpop.f32.mrb[0].mxu0
        %v661 = vadd.f32 0.0, %v660
        %v662 = vpop.f32.mrb[0].mxu0
        %v663 = vadd.f32 0.0, %v662
        %664 = vdwg.mxu0
        %v669 = vunpack.c.l.b16 %v532
        %v670 = vunpack.c.l.b16 %v533
        %v671 = vunpack.c.l.b16 %v534
        %v672 = vunpack.c.l.b16 %v535
        %v673 = vpack.c.b16 %v670, %v669
        %v674 = vpack.c.b16 %v672, %v671
        %v676 = vsel %vm605, %v673, 0
        %v679 = vsel %vm605, %v674, 0
        %681 = vmatprep.subr.bf16.mxu0 %v537
        %682 = vmatpush1.bf16.msra.mxu0 %v536
        %683 = vmatprep.subr.bf16.mxu0 %v539
        %684 = vmatpush1.bf16.msra.mxu0 %v538
        %685 = vmatprep.subr.bf16.mxu0 0
        %686 = vmatpush1.bf16.msra.mxu0 0
        %687 = vmatprep.subr.bf16.mxu0 0
        %688 = vmatpush1.bf16.msra.mxu0 0
        %689 = vmatprep.subr.bf16.mxu0 0
        %690 = vmatpush1.bf16.msra.mxu0 0
        %691 = vmatprep.subr.bf16.mxu0 0
        %692 = vmatpush1.bf16.msra.mxu0 0
        %693 = vmatprep.subr.bf16.mxu0 0
        %694 = vmatpush1.bf16.msra.mxu0 0
        %695 = vmatprep.subr.bf16.mxu0 0
        %696 = vmatpush1.bf16.msra.mxu0 0
        %697 = vmatprep.subr.bf16.mxu0 0
        %698 = vmatpush1.bf16.msra.mxu0 0
        %699 = vmatprep.subr.bf16.mxu0 0
        %700 = vmatpush1.bf16.msra.mxu0 0
        %701 = vmatprep.subr.bf16.mxu0 0
        %702 = vmatpush1.bf16.msra.mxu0 0
        %703 = vmatprep.subr.bf16.mxu0 0
        %704 = vmatpush1.bf16.msra.mxu0 0
        %705 = vmatprep.subr.bf16.mxu0 0
        %706 = vmatpush1.bf16.msra.mxu0 0
        %707 = vmatprep.subr.bf16.mxu0 0
        %708 = vmatpush1.bf16.msra.mxu0 0
        %709 = vmatprep.subr.bf16.mxu0 0
        %710 = vmatpush1.bf16.msra.mxu0 0
        %711 = vmatprep.subr.bf16.mxu0 0
        %712 = vmatpush1.bf16.msra.mxu0 0
        %713 = vmatprep.mubr.bf16.mxu0 0
        %714 = vmatmul.mubr.bf16.gmra.mrb[0].mxu0 %v676
        %v715 = vpop.f32.mrb[0].mxu0
        %v716 = vadd.f32 %v647, %v715
        %v717 = vpop.f32.mrb[0].mxu0
        %v718 = vadd.f32 %v649, %v717
        %v719 = vpop.f32.mrb[0].mxu0
        %v720 = vadd.f32 %v651, %v719
        %v721 = vpop.f32.mrb[0].mxu0
        %v722 = vadd.f32 %v653, %v721
        %723 = vmatprep.mubr.bf16.mxu0 0
        %724 = vmatmul.mubr.bf16.gmra.mrb[0].mxu0 %v679
        %v725 = vpop.f32.mrb[0].mxu0
        %v726 = vadd.f32 %v657, %v725
        %v727 = vpop.f32.mrb[0].mxu0
        %v728 = vadd.f32 %v659, %v727
        %v729 = vpop.f32.mrb[0].mxu0
        %v730 = vadd.f32 %v661, %v729
        %v731 = vpop.f32.mrb[0].mxu0
        %v732 = vadd.f32 %v663, %v731
        %733 = vdwg.mxu0
        %734 = vrot.lane.b32.xlu0 %v477, 15
        %v735 = vpop.permute.xlu0 %734
        %736 = vrot.lane.b32.xlu0 %v479, 15
        %v737 = vpop.permute.xlu0 %736
        %738 = vrot.lane.b32.xlu0 %v481, 15
        %v739 = vpop.permute.xlu0 %738
        %740 = vrot.lane.b32.xlu0 %v483, 15
        %v741 = vpop.permute.xlu0 %740
        %742 = vrot.lane.b32.xlu0 %v478, 15
        %v743 = vpop.permute.xlu0 %742
        %744 = vrot.lane.b32.xlu0 %v480, 15
        %v745 = vpop.permute.xlu0 %744
        %746 = vrot.lane.b32.xlu0 %v482, 15
        %v747 = vpop.permute.xlu0 %746
        %748 = vrot.lane.b32.xlu0 %v484, 15
        %v749 = vpop.permute.xlu0 %748
        %vm750 = vcmp.lt.s32.totalorder %v502, 15
        %v751 = vsel %vm750, %v735, %v743
        %v752 = vsel %vm750, %v737, %v745
        %v753 = vsel %vm750, %v739, %v747
        %v754 = vsel %vm750, %v741, %v749
        %v755 = vsel %vm750, %v743, %v735
        %v756 = vsel %vm750, %v745, %v737
        %v757 = vsel %vm750, %v747, %v739
        %v758 = vsel %vm750, %v749, %v741
        %s759 = scalar_lea.vmem %s1, 2
        %v760 = vld [vmem:[%s759] ss:$8 sm:$0x3]
        %v762 = vlaneseq
        %v763 = vshrl.u32 %v762, 7
        %v764 = vsub.s32 0, %v763
        %v765 = vrot.slane %v760, %v764
        %v766 = vlaneseq
        %v767 = vshrl.u32 %v766, 7
        %v768 = vsub.s32 1, %v767
        %v769 = vrot.slane %v760, %v768
        %v772 = vmul.f32 %v755, %v765
        %v773 = vmul.f32 %v751, %v769
        %v774 = vmul.f32 %v756, %v765
        %v775 = vmul.f32 %v752, %v769
        %v776 = vmul.f32 %v757, %v765
        %v777 = vmul.f32 %v753, %v769
        %v778 = vmul.f32 %v758, %v765
        %v779 = vmul.f32 %v754, %v769
        %s780 = scalar_lea.vmem [#allocation2], 32
        %v781 = vld [vmem:[%s780] sm:$0xf]
        %v782 = vld [vmem:[%s780 + $0x4] sm:$0xf]
        %v783 = vld [vmem:[%s780 + $0x8] sm:$0xf]
        %v784 = vld [vmem:[%s780 + $0xc] sm:$0xf]
        %v785 = vpack.c.bf16 %v774, %v772
        %v786 = vpack.c.bf16 %v775, %v773
        %v787 = vpack.c.bf16 %v778, %v776
        %v788 = vpack.c.bf16 %v779, %v777
        %v793 = vunpack.c.l.b16 %v781
        %v794 = vunpack.c.l.b16 %v782
        %v795 = vunpack.c.l.b16 %v783
        %v796 = vunpack.c.l.b16 %v784
        %v797 = vpack.c.b16 %v794, %v793
        %v798 = vpack.c.b16 %v796, %v795
        %v800 = vsel %vm605, %v797, 0
        %v803 = vsel %vm605, %v798, 0
        %805 = vmatprep.subr.bf16.mxu0 %v786
        %806 = vmatpush1.bf16.msra.mxu0 %v785
        %807 = vmatprep.subr.bf16.mxu0 %v788
        %808 = vmatpush1.bf16.msra.mxu0 %v787
        %809 = vmatprep.subr.bf16.mxu0 0
        %810 = vmatpush1.bf16.msra.mxu0 0
        %811 = vmatprep.subr.bf16.mxu0 0
        %812 = vmatpush1.bf16.msra.mxu0 0
        %813 = vmatprep.subr.bf16.mxu0 0
        %814 = vmatpush1.bf16.msra.mxu0 0
        %815 = vmatprep.subr.bf16.mxu0 0
        %816 = vmatpush1.bf16.msra.mxu0 0
        %817 = vmatprep.subr.bf16.mxu0 0
        %818 = vmatpush1.bf16.msra.mxu0 0
        %819 = vmatprep.subr.bf16.mxu0 0
        %820 = vmatpush1.bf16.msra.mxu0 0
        %821 = vmatprep.subr.bf16.mxu0 0
        %822 = vmatpush1.bf16.msra.mxu0 0
        %823 = vmatprep.subr.bf16.mxu0 0
        %824 = vmatpush1.bf16.msra.mxu0 0
        %825 = vmatprep.subr.bf16.mxu0 0
        %826 = vmatpush1.bf16.msra.mxu0 0
        %827 = vmatprep.subr.bf16.mxu0 0
        %828 = vmatpush1.bf16.msra.mxu0 0
        %829 = vmatprep.subr.bf16.mxu0 0
        %830 = vmatpush1.bf16.msra.mxu0 0
        %831 = vmatprep.subr.bf16.mxu0 0
        %832 = vmatpush1.bf16.msra.mxu0 0
        %833 = vmatprep.subr.bf16.mxu0 0
        %834 = vmatpush1.bf16.msra.mxu0 0
        %835 = vmatprep.subr.bf16.mxu0 0
        %836 = vmatpush1.bf16.msra.mxu0 0
        %837 = vmatprep.mubr.bf16.mxu0 0
        %838 = vmatmul.mubr.bf16.gmra.mrb[0].mxu0 %v800
        %v839 = vpop.f32.mrb[0].mxu0
        %v840 = vadd.f32 0.0, %v839
        %v841 = vpop.f32.mrb[0].mxu0
        %v842 = vadd.f32 0.0, %v841
        %v843 = vpop.f32.mrb[0].mxu0
        %v844 = vadd.f32 0.0, %v843
        %v845 = vpop.f32.mrb[0].mxu0
        %v846 = vadd.f32 0.0, %v845
        %847 = vmatprep.mubr.bf16.mxu0 0
        %848 = vmatmul.mubr.bf16.gmra.mrb[0].mxu0 %v803
        %v849 = vpop.f32.mrb[0].mxu0
        %v850 = vadd.f32 0.0, %v849
        %v851 = vpop.f32.mrb[0].mxu0
        %v852 = vadd.f32 0.0, %v851
        %v853 = vpop.f32.mrb[0].mxu0
        %v854 = vadd.f32 0.0, %v853
        %v855 = vpop.f32.mrb[0].mxu0
        %v856 = vadd.f32 0.0, %v855
        %857 = vdwg.mxu0
        %v858 = vadd.f32 %v716, %v840
        %v859 = vadd.f32 %v718, %v842
        %v860 = vadd.f32 %v720, %v844
        %v861 = vadd.f32 %v722, %v846
        %v862 = vadd.f32 %v726, %v850
        %v863 = vadd.f32 %v728, %v852
        %v864 = vadd.f32 %v730, %v854
        %v865 = vadd.f32 %v732, %v856
        %866 = vrot.lane.b32.xlu0 %v477, 1
        %v867 = vpop.permute.xlu0 %866
        %868 = vrot.lane.b32.xlu0 %v479, 1
        %v869 = vpop.permute.xlu0 %868
        %870 = vrot.lane.b32.xlu0 %v481, 1
        %v871 = vpop.permute.xlu0 %870
        %872 = vrot.lane.b32.xlu0 %v483, 1
        %v873 = vpop.permute.xlu0 %872
        %874 = vrot.lane.b32.xlu0 %v478, 1
        %v875 = vpop.permute.xlu0 %874
        %876 = vrot.lane.b32.xlu0 %v480, 1
        %v877 = vpop.permute.xlu0 %876
        %878 = vrot.lane.b32.xlu0 %v482, 1
        %v879 = vpop.permute.xlu0 %878
        %880 = vrot.lane.b32.xlu0 %v484, 1
        %v881 = vpop.permute.xlu0 %880
        %vm882 = vcmp.lt.s32.totalorder %v502, 1
        %v883 = vsel %vm882, %v867, %v875
        %v884 = vsel %vm882, %v869, %v877
        %v885 = vsel %vm882, %v871, %v879
        %v886 = vsel %vm882, %v873, %v881
        %v887 = vsel %vm882, %v875, %v867
        %v888 = vsel %vm882, %v877, %v869
        %v889 = vsel %vm882, %v879, %v871
        %v890 = vsel %vm882, %v881, %v873
        %s891 = scalar_lea.vmem %s1, 3
        %v892 = vld [vmem:[%s891] ss:$8 sm:$0x3]
        %v894 = vlaneseq
        %v895 = vshrl.u32 %v894, 7
        %v896 = vsub.s32 0, %v895
        %v897 = vrot.slane %v892, %v896
        %v898 = vlaneseq
        %v899 = vshrl.u32 %v898, 7
        %v900 = vsub.s32 1, %v899
        %v901 = vrot.slane %v892, %v900
        %v904 = vmul.f32 %v887, %v897
        %v905 = vmul.f32 %v883, %v901
        %v906 = vmul.f32 %v888, %v897
        %v907 = vmul.f32 %v884, %v901
        %v908 = vmul.f32 %v889, %v897
        %v909 = vmul.f32 %v885, %v901
        %v910 = vmul.f32 %v890, %v897
        %v911 = vmul.f32 %v886, %v901
        %s912 = scalar_lea.vmem [#allocation2], 48
        %v913 = vld [vmem:[%s912] sm:$0xf]
        %v914 = vld [vmem:[%s912 + $0x4] sm:$0xf]
        %v915 = vld [vmem:[%s912 + $0x8] sm:$0xf]
        %v916 = vld [vmem:[%s912 + $0xc] sm:$0xf]
        %v917 = vpack.c.bf16 %v906, %v904
        %v918 = vpack.c.bf16 %v907, %v905
        %v919 = vpack.c.bf16 %v910, %v908
        %v920 = vpack.c.bf16 %v911, %v909
        %v925 = vunpack.c.l.b16 %v913
        %v926 = vunpack.c.l.b16 %v914
        %v927 = vunpack.c.l.b16 %v915
        %v928 = vunpack.c.l.b16 %v916
        %v929 = vpack.c.b16 %v926, %v925
        %v930 = vpack.c.b16 %v928, %v927
        %v932 = vsel %vm605, %v929, 0
        %v935 = vsel %vm605, %v930, 0
        %937 = vmatprep.subr.bf16.mxu0 %v918
        %938 = vmatpush1.bf16.msra.mxu0 %v917
        %939 = vmatprep.subr.bf16.mxu0 %v920
        %940 = vmatpush1.bf16.msra.mxu0 %v919
        %941 = vmatprep.subr.bf16.mxu0 0
        %942 = vmatpush1.bf16.msra.mxu0 0
        %943 = vmatprep.subr.bf16.mxu0 0
        %944 = vmatpush1.bf16.msra.mxu0 0
        %945 = vmatprep.subr.bf16.mxu0 0
        %946 = vmatpush1.bf16.msra.mxu0 0
        %947 = vmatprep.subr.bf16.mxu0 0
        %948 = vmatpush1.bf16.msra.mxu0 0
        %949 = vmatprep.subr.bf16.mxu0 0
        %950 = vmatpush1.bf16.msra.mxu0 0
        %951 = vmatprep.subr.bf16.mxu0 0
        %952 = vmatpush1.bf16.msra.mxu0 0
        %953 = vmatprep.subr.bf16.mxu0 0
        %954 = vmatpush1.bf16.msra.mxu0 0
        %955 = vmatprep.subr.bf16.mxu0 0
        %956 = vmatpush1.bf16.msra.mxu0 0
        %957 = vmatprep.subr.bf16.mxu0 0
        %958 = vmatpush1.bf16.msra.mxu0 0
        %959 = vmatprep.subr.bf16.mxu0 0
        %960 = vmatpush1.bf16.msra.mxu0 0
        %961 = vmatprep.subr.bf16.mxu0 0
        %962 = vmatpush1.bf16.msra.mxu0 0
        %963 = vmatprep.subr.bf16.mxu0 0
        %964 = vmatpush1.bf16.msra.mxu0 0
        %965 = vmatprep.subr.bf16.mxu0 0
        %966 = vmatpush1.bf16.msra.mxu0 0
        %967 = vmatprep.subr.bf16.mxu0 0
        %968 = vmatpush1.bf16.msra.mxu0 0
        %969 = vmatprep.mubr.bf16.mxu0 0
        %970 = vmatmul.mubr.bf16.gmra.mrb[0].mxu0 %v932
        %v971 = vpop.f32.mrb[0].mxu0
        %v972 = vadd.f32 0.0, %v971
        %v973 = vpop.f32.mrb[0].mxu0
        %v974 = vadd.f32 0.0, %v973
        %v975 = vpop.f32.mrb[0].mxu0
        %v976 = vadd.f32 0.0, %v975
        %v977 = vpop.f32.mrb[0].mxu0
        %v978 = vadd.f32 0.0, %v977
        %979 = vmatprep.mubr.bf16.mxu0 0
        %980 = vmatmul.mubr.bf16.gmra.mrb[0].mxu0 %v935
        %v981 = vpop.f32.mrb[0].mxu0
        %v982 = vadd.f32 0.0, %v981
        %v983 = vpop.f32.mrb[0].mxu0
        %v984 = vadd.f32 0.0, %v983
        %v985 = vpop.f32.mrb[0].mxu0
        %v986 = vadd.f32 0.0, %v985
        %v987 = vpop.f32.mrb[0].mxu0
        %v988 = vadd.f32 0.0, %v987
        %989 = vdwg.mxu0
        %v990 = vadd.f32 %v858, %v972
        %v991 = vadd.f32 %v859, %v974
        %v992 = vadd.f32 %v860, %v976
        %v993 = vadd.f32 %v861, %v978
        %v994 = vadd.f32 %v862, %v982
        %v995 = vadd.f32 %v863, %v984
        %v996 = vadd.f32 %v864, %v986
        %v997 = vadd.f32 %v865, %v988
        %s998 = scalar_lea.vmem [#allocation2], 64
        %v999 = vld [vmem:[%s998] sm:$0xf]
        %v1000 = vld [vmem:[%s998 + $0x4] sm:$0xf]
        %v1001 = vld [vmem:[%s998 + $0x8] sm:$0xf]
        %v1002 = vld [vmem:[%s998 + $0xc] sm:$0xf]
        %v1003 = vpack.c.bf16 %v479, %v477
        %v1004 = vpack.c.bf16 %v480, %v478
        %v1005 = vpack.c.bf16 %v483, %v481
        %v1006 = vpack.c.bf16 %v484, %v482
        %v1011 = vunpack.c.l.b16 %v999
        %v1012 = vunpack.c.l.b16 %v1000
        %v1013 = vunpack.c.l.b16 %v1001
        %v1014 = vunpack.c.l.b16 %v1002
        %v1015 = vpack.c.b16 %v1012, %v1011
        %v1016 = vpack.c.b16 %v1014, %v1013
        %v1018 = vsel %vm605, %v1015, 0
        %v1021 = vsel %vm605, %v1016, 0
        %1023 = vmatprep.subr.bf16.mxu0 %v1004
        %1024 = vmatpush1.bf16.msra.mxu0 %v1003
        %1025 = vmatprep.subr.bf16.mxu0 %v1006
        %1026 = vmatpush1.bf16.msra.mxu0 %v1005
        %1027 = vmatprep.subr.bf16.mxu0 0
        %1028 = vmatpush1.bf16.msra.mxu0 0
        %1029 = vmatprep.subr.bf16.mxu0 0
        %1030 = vmatpush1.bf16.msra.mxu0 0
        %1031 = vmatprep.subr.bf16.mxu0 0
        %1032 = vmatpush1.bf16.msra.mxu0 0
        %1033 = vmatprep.subr.bf16.mxu0 0
        %1034 = vmatpush1.bf16.msra.mxu0 0
        %1035 = vmatprep.subr.bf16.mxu0 0
        %1036 = vmatpush1.bf16.msra.mxu0 0
        %1037 = vmatprep.subr.bf16.mxu0 0
        %1038 = vmatpush1.bf16.msra.mxu0 0
        %1039 = vmatprep.subr.bf16.mxu0 0
        %1040 = vmatpush1.bf16.msra.mxu0 0
        %1041 = vmatprep.subr.bf16.mxu0 0
        %1042 = vmatpush1.bf16.msra.mxu0 0
        %1043 = vmatprep.subr.bf16.mxu0 0
        %1044 = vmatpush1.bf16.msra.mxu0 0
        %1045 = vmatprep.subr.bf16.mxu0 0
        %1046 = vmatpush1.bf16.msra.mxu0 0
        %1047 = vmatprep.subr.bf16.mxu0 0
        %1048 = vmatpush1.bf16.msra.mxu0 0
        %1049 = vmatprep.subr.bf16.mxu0 0
        %1050 = vmatpush1.bf16.msra.mxu0 0
        %1051 = vmatprep.subr.bf16.mxu0 0
        %1052 = vmatpush1.bf16.msra.mxu0 0
        %1053 = vmatprep.subr.bf16.mxu0 0
        %1054 = vmatpush1.bf16.msra.mxu0 0
        %1055 = vmatprep.mubr.bf16.mxu0 0
        %1056 = vmatmul.mubr.bf16.gmra.mrb[0].mxu0 %v1018
        %v1057 = vpop.f32.mrb[0].mxu0
        %v1058 = vadd.f32 0.0, %v1057
        %v1059 = vpop.f32.mrb[0].mxu0
        %v1060 = vadd.f32 0.0, %v1059
        %v1061 = vpop.f32.mrb[0].mxu0
        %v1062 = vadd.f32 0.0, %v1061
        %v1063 = vpop.f32.mrb[0].mxu0
        %v1064 = vadd.f32 0.0, %v1063
        %1065 = vmatprep.mubr.bf16.mxu0 0
        %1066 = vmatmul.mubr.bf16.gmra.mrb[0].mxu0 %v1021
        %v1067 = vpop.f32.mrb[0].mxu0
        %v1068 = vadd.f32 0.0, %v1067
        %v1069 = vpop.f32.mrb[0].mxu0
        %v1070 = vadd.f32 0.0, %v1069
        %v1071 = vpop.f32.mrb[0].mxu0
        %v1072 = vadd.f32 0.0, %v1071
        %v1073 = vpop.f32.mrb[0].mxu0
        %v1074 = vadd.f32 0.0, %v1073
        %1075 = vdwg.mxu0
        %v1076 = vadd.f32 %v990, %v1058
        %v1077 = vadd.f32 %v991, %v1060
        %v1078 = vadd.f32 %v992, %v1062
        %v1079 = vadd.f32 %v993, %v1064
        %v1080 = vadd.f32 %v994, %v1068
        %v1081 = vadd.f32 %v995, %v1070
        %v1082 = vadd.f32 %v996, %v1072
        %v1083 = vadd.f32 %v997, %v1074
        %1084 = vrot.lane.b32.xlu0 %v477, 127
        %v1085 = vpop.permute.xlu0 %1084
        %1086 = vrot.lane.b32.xlu0 %v479, 127
        %v1087 = vpop.permute.xlu0 %1086
        %1088 = vrot.lane.b32.xlu0 %v481, 127
        %v1089 = vpop.permute.xlu0 %1088
        %1090 = vrot.lane.b32.xlu0 %v483, 127
        %v1091 = vpop.permute.xlu0 %1090
        %1092 = vrot.lane.b32.xlu0 %v478, 127
        %v1093 = vpop.permute.xlu0 %1092
        %1094 = vrot.lane.b32.xlu0 %v480, 127
        %v1095 = vpop.permute.xlu0 %1094
        %1096 = vrot.lane.b32.xlu0 %v482, 127
        %v1097 = vpop.permute.xlu0 %1096
        %1098 = vrot.lane.b32.xlu0 %v484, 127
        %v1099 = vpop.permute.xlu0 %1098
        %vm1100 = vcmp.lt.s32.totalorder %v502, 127
        %v1101 = vsel %vm1100, %v1085, %v1093
        %v1102 = vsel %vm1100, %v1087, %v1095
        %v1103 = vsel %vm1100, %v1089, %v1097
        %v1104 = vsel %vm1100, %v1091, %v1099
        %v1105 = vsel %vm1100, %v1093, %v1085
        %v1106 = vsel %vm1100, %v1095, %v1087
        %v1107 = vsel %vm1100, %v1097, %v1089
        %v1108 = vsel %vm1100, %v1099, %v1091
        %s1109 = scalar_lea.vmem %s1, 5
        %v1110 = vld [vmem:[%s1109] ss:$8 sm:$0x3]
        %v1112 = vlaneseq
        %v1113 = vshrl.u32 %v1112, 7
        %v1114 = vsub.s32 0, %v1113
        %v1115 = vrot.slane %v1110, %v1114
        %v1116 = vlaneseq
        %v1117 = vshrl.u32 %v1116, 7
        %v1118 = vsub.s32 1, %v1117
        %v1119 = vrot.slane %v1110, %v1118
        %v1122 = vmul.f32 %v1101, %v1115
        %v1123 = vmul.f32 %v1105, %v1119
        %v1124 = vmul.f32 %v1102, %v1115
        %v1125 = vmul.f32 %v1106, %v1119
        %v1126 = vmul.f32 %v1103, %v1115
        %v1127 = vmul.f32 %v1107, %v1119
        %v1128 = vmul.f32 %v1104, %v1115
        %v1129 = vmul.f32 %v1108, %v1119
        %s1130 = scalar_lea.vmem [#allocation2], 80
        %v1131 = vld [vmem:[%s1130] sm:$0xf]
        %v1132 = vld [vmem:[%s1130 + $0x4] sm:$0xf]
        %v1133 = vld [vmem:[%s1130 + $0x8] sm:$0xf]
        %v1134 = vld [vmem:[%s1130 + $0xc] sm:$0xf]
        %v1135 = vpack.c.bf16 %v1124, %v1122
        %v1136 = vpack.c.bf16 %v1125, %v1123
        %v1137 = vpack.c.bf16 %v1128, %v1126
        %v1138 = vpack.c.bf16 %v1129, %v1127
        %v1143 = vunpack.c.l.b16 %v1131
        %v1144 = vunpack.c.l.b16 %v1132
        %v1145 = vunpack.c.l.b16 %v1133
        %v1146 = vunpack.c.l.b16 %v1134
        %v1147 = vpack.c.b16 %v1144, %v1143
        %v1148 = vpack.c.b16 %v1146, %v1145
        %v1150 = vsel %vm605, %v1147, 0
        %v1153 = vsel %vm605, %v1148, 0
        %1155 = vmatprep.subr.bf16.mxu0 %v1136
        %1156 = vmatpush1.bf16.msra.mxu0 %v1135
        %1157 = vmatprep.subr.bf16.mxu0 %v1138
        %1158 = vmatpush1.bf16.msra.mxu0 %v1137
        %1159 = vmatprep.subr.bf16.mxu0 0
        %1160 = vmatpush1.bf16.msra.mxu0 0
        %1161 = vmatprep.subr.bf16.mxu0 0
        %1162 = vmatpush1.bf16.msra.mxu0 0
        %1163 = vmatprep.subr.bf16.mxu0 0
        %1164 = vmatpush1.bf16.msra.mxu0 0
        %1165 = vmatprep.subr.bf16.mxu0 0
        %1166 = vmatpush1.bf16.msra.mxu0 0
        %1167 = vmatprep.subr.bf16.mxu0 0
        %1168 = vmatpush1.bf16.msra.mxu0 0
        %1169 = vmatprep.subr.bf16.mxu0 0
        %1170 = vmatpush1.bf16.msra.mxu0 0
        %1171 = vmatprep.subr.bf16.mxu0 0
        %1172 = vmatpush1.bf16.msra.mxu0 0
        %1173 = vmatprep.subr.bf16.mxu0 0
        %1174 = vmatpush1.bf16.msra.mxu0 0
        %1175 = vmatprep.subr.bf16.mxu0 0
        %1176 = vmatpush1.bf16.msra.mxu0 0
        %1177 = vmatprep.subr.bf16.mxu0 0
        %1178 = vmatpush1.bf16.msra.mxu0 0
        %1179 = vmatprep.subr.bf16.mxu0 0
        %1180 = vmatpush1.bf16.msra.mxu0 0
        %1181 = vmatprep.subr.bf16.mxu0 0
        %1182 = vmatpush1.bf16.msra.mxu0 0
        %1183 = vmatprep.subr.bf16.mxu0 0
        %1184 = vmatpush1.bf16.msra.mxu0 0
        %1185 = vmatprep.subr.bf16.mxu0 0
        %1186 = vmatpush1.bf16.msra.mxu0 0
        %1187 = vmatprep.mubr.bf16.mxu0 0
        %1188 = vmatmul.mubr.bf16.gmra.mrb[0].mxu0 %v1150
        %v1189 = vpop.f32.mrb[0].mxu0
        %v1190 = vadd.f32 0.0, %v1189
        %v1191 = vpop.f32.mrb[0].mxu0
        %v1192 = vadd.f32 0.0, %v1191
        %v1193 = vpop.f32.mrb[0].mxu0
        %v1194 = vadd.f32 0.0, %v1193
        %v1195 = vpop.f32.mrb[0].mxu0
        %v1196 = vadd.f32 0.0, %v1195
        %1197 = vmatprep.mubr.bf16.mxu0 0
        %1198 = vmatmul.mubr.bf16.gmra.mrb[0].mxu0 %v1153
        %v1199 = vpop.f32.mrb[0].mxu0
        %v1200 = vadd.f32 0.0, %v1199
        %v1201 = vpop.f32.mrb[0].mxu0
        %v1202 = vadd.f32 0.0, %v1201
        %v1203 = vpop.f32.mrb[0].mxu0
        %v1204 = vadd.f32 0.0, %v1203
        %v1205 = vpop.f32.mrb[0].mxu0
        %v1206 = vadd.f32 0.0, %v1205
        %1207 = vdwg.mxu0
        %v1208 = vadd.f32 %v1076, %v1190
        %v1209 = vadd.f32 %v1077, %v1192
        %v1210 = vadd.f32 %v1078, %v1194
        %v1211 = vadd.f32 %v1079, %v1196
        %v1212 = vadd.f32 %v1080, %v1200
        %v1213 = vadd.f32 %v1081, %v1202
        %v1214 = vadd.f32 %v1082, %v1204
        %v1215 = vadd.f32 %v1083, %v1206
        %1216 = vrot.lane.b32.xlu0 %v477, 113
        %v1217 = vpop.permute.xlu0 %1216
        %1218 = vrot.lane.b32.xlu0 %v479, 113
        %v1219 = vpop.permute.xlu0 %1218
        %1220 = vrot.lane.b32.xlu0 %v481, 113
        %v1221 = vpop.permute.xlu0 %1220
        %1222 = vrot.lane.b32.xlu0 %v483, 113
        %v1223 = vpop.permute.xlu0 %1222
        %1224 = vrot.lane.b32.xlu0 %v478, 113
        %v1225 = vpop.permute.xlu0 %1224
        %1226 = vrot.lane.b32.xlu0 %v480, 113
        %v1227 = vpop.permute.xlu0 %1226
        %1228 = vrot.lane.b32.xlu0 %v482, 113
        %v1229 = vpop.permute.xlu0 %1228
        %1230 = vrot.lane.b32.xlu0 %v484, 113
        %v1231 = vpop.permute.xlu0 %1230
        %vm1232 = vcmp.lt.s32.totalorder %v502, 113
        %v1233 = vsel %vm1232, %v1217, %v1225
        %v1234 = vsel %vm1232, %v1219, %v1227
        %v1235 = vsel %vm1232, %v1221, %v1229
        %v1236 = vsel %vm1232, %v1223, %v1231
        %v1237 = vsel %vm1232, %v1225, %v1217
        %v1238 = vsel %vm1232, %v1227, %v1219
        %v1239 = vsel %vm1232, %v1229, %v1221
        %v1240 = vsel %vm1232, %v1231, %v1223
        %s1241 = scalar_lea.vmem %s1, 6
        %v1242 = vld [vmem:[%s1241] ss:$8 sm:$0x3]
        %v1244 = vlaneseq
        %v1245 = vshrl.u32 %v1244, 7
        %v1246 = vsub.s32 0, %v1245
        %v1247 = vrot.slane %v1242, %v1246
        %v1248 = vlaneseq
        %v1249 = vshrl.u32 %v1248, 7
        %v1250 = vsub.s32 1, %v1249
        %v1251 = vrot.slane %v1242, %v1250
        %v1254 = vmul.f32 %v1233, %v1247
        %v1255 = vmul.f32 %v1237, %v1251
        %v1256 = vmul.f32 %v1234, %v1247
        %v1257 = vmul.f32 %v1238, %v1251
        %v1258 = vmul.f32 %v1235, %v1247
        %v1259 = vmul.f32 %v1239, %v1251
        %v1260 = vmul.f32 %v1236, %v1247
        %v1261 = vmul.f32 %v1240, %v1251
        %s1262 = scalar_lea.vmem [#allocation2], 96
        %v1263 = vld [vmem:[%s1262] sm:$0xf]
        %v1264 = vld [vmem:[%s1262 + $0x4] sm:$0xf]
        %v1265 = vld [vmem:[%s1262 + $0x8] sm:$0xf]
        %v1266 = vld [vmem:[%s1262 + $0xc] sm:$0xf]
        %v1267 = vpack.c.bf16 %v1256, %v1254
        %v1268 = vpack.c.bf16 %v1257, %v1255
        %v1269 = vpack.c.bf16 %v1260, %v1258
        %v1270 = vpack.c.bf16 %v1261, %v1259
        %v1275 = vunpack.c.l.b16 %v1263
        %v1276 = vunpack.c.l.b16 %v1264
        %v1277 = vunpack.c.l.b16 %v1265
        %v1278 = vunpack.c.l.b16 %v1266
        %v1279 = vpack.c.b16 %v1276, %v1275
        %v1280 = vpack.c.b16 %v1278, %v1277
        %v1282 = vsel %vm605, %v1279, 0
        %v1285 = vsel %vm605, %v1280, 0
        %1287 = vmatprep.subr.bf16.mxu0 %v1268
        %1288 = vmatpush1.bf16.msra.mxu0 %v1267
        %1289 = vmatprep.subr.bf16.mxu0 %v1270
        %1290 = vmatpush1.bf16.msra.mxu0 %v1269
        %1291 = vmatprep.subr.bf16.mxu0 0
        %1292 = vmatpush1.bf16.msra.mxu0 0
        %1293 = vmatprep.subr.bf16.mxu0 0
        %1294 = vmatpush1.bf16.msra.mxu0 0
        %1295 = vmatprep.subr.bf16.mxu0 0
        %1296 = vmatpush1.bf16.msra.mxu0 0
        %1297 = vmatprep.subr.bf16.mxu0 0
        %1298 = vmatpush1.bf16.msra.mxu0 0
        %1299 = vmatprep.subr.bf16.mxu0 0
        %1300 = vmatpush1.bf16.msra.mxu0 0
        %1301 = vmatprep.subr.bf16.mxu0 0
        %1302 = vmatpush1.bf16.msra.mxu0 0
        %1303 = vmatprep.subr.bf16.mxu0 0
        %1304 = vmatpush1.bf16.msra.mxu0 0
        %1305 = vmatprep.subr.bf16.mxu0 0
        %1306 = vmatpush1.bf16.msra.mxu0 0
        %1307 = vmatprep.subr.bf16.mxu0 0
        %1308 = vmatpush1.bf16.msra.mxu0 0
        %1309 = vmatprep.subr.bf16.mxu0 0
        %1310 = vmatpush1.bf16.msra.mxu0 0
        %1311 = vmatprep.subr.bf16.mxu0 0
        %1312 = vmatpush1.bf16.msra.mxu0 0
        %1313 = vmatprep.subr.bf16.mxu0 0
        %1314 = vmatpush1.bf16.msra.mxu0 0
        %1315 = vmatprep.subr.bf16.mxu0 0
        %1316 = vmatpush1.bf16.msra.mxu0 0
        %1317 = vmatprep.subr.bf16.mxu0 0
        %1318 = vmatpush1.bf16.msra.mxu0 0
        %1319 = vmatprep.mubr.bf16.mxu0 0
        %1320 = vmatmul.mubr.bf16.gmra.mrb[0].mxu0 %v1282
        %v1321 = vpop.f32.mrb[0].mxu0
        %v1322 = vadd.f32 0.0, %v1321
        %v1323 = vpop.f32.mrb[0].mxu0
        %v1324 = vadd.f32 0.0, %v1323
        %v1325 = vpop.f32.mrb[0].mxu0
        %v1326 = vadd.f32 0.0, %v1325
        %v1327 = vpop.f32.mrb[0].mxu0
        %v1328 = vadd.f32 0.0, %v1327
        %1329 = vmatprep.mubr.bf16.mxu0 0
        %1330 = vmatmul.mubr.bf16.gmra.mrb[0].mxu0 %v1285
        %v1331 = vpop.f32.mrb[0].mxu0
        %v1332 = vadd.f32 0.0, %v1331
        %v1333 = vpop.f32.mrb[0].mxu0
        %v1334 = vadd.f32 0.0, %v1333
        %v1335 = vpop.f32.mrb[0].mxu0
        %v1336 = vadd.f32 0.0, %v1335
        %v1337 = vpop.f32.mrb[0].mxu0
        %v1338 = vadd.f32 0.0, %v1337
        %1339 = vdwg.mxu0
        %v1340 = vadd.f32 %v1208, %v1322
        %v1341 = vadd.f32 %v1209, %v1324
        %v1342 = vadd.f32 %v1210, %v1326
        %v1343 = vadd.f32 %v1211, %v1328
        %v1344 = vadd.f32 %v1212, %v1332
        %v1345 = vadd.f32 %v1213, %v1334
        %v1346 = vadd.f32 %v1214, %v1336
        %v1347 = vadd.f32 %v1215, %v1338
        %1348 = vrot.lane.b32.xlu0 %v477, 112
        %v1349 = vpop.permute.xlu0 %1348
        %1350 = vrot.lane.b32.xlu0 %v479, 112
        %v1351 = vpop.permute.xlu0 %1350
        %1352 = vrot.lane.b32.xlu0 %v481, 112
        %v1353 = vpop.permute.xlu0 %1352
        %1354 = vrot.lane.b32.xlu0 %v483, 112
        %v1355 = vpop.permute.xlu0 %1354
        %1356 = vrot.lane.b32.xlu0 %v478, 112
        %v1357 = vpop.permute.xlu0 %1356
        %1358 = vrot.lane.b32.xlu0 %v480, 112
        %v1359 = vpop.permute.xlu0 %1358
        %1360 = vrot.lane.b32.xlu0 %v482, 112
        %v1361 = vpop.permute.xlu0 %1360
        %1362 = vrot.lane.b32.xlu0 %v484, 112
        %v1363 = vpop.permute.xlu0 %1362
        %vm1364 = vcmp.lt.s32.totalorder %v502, 112
        %v1365 = vsel %vm1364, %v1349, %v1357
        %v1366 = vsel %vm1364, %v1351, %v1359
        %v1367 = vsel %vm1364, %v1353, %v1361
        %v1368 = vsel %vm1364, %v1355, %v1363
        %v1369 = vsel %vm1364, %v1357, %v1349
        %v1370 = vsel %vm1364, %v1359, %v1351
        %v1371 = vsel %vm1364, %v1361, %v1353
        %v1372 = vsel %vm1364, %v1363, %v1355
        %s1373 = scalar_lea.vmem %s1, 7
        %v1374 = vld [vmem:[%s1373] ss:$8 sm:$0x3]
        %v1376 = vlaneseq
        %v1377 = vshrl.u32 %v1376, 7
        %v1378 = vsub.s32 0, %v1377
        %v1379 = vrot.slane %v1374, %v1378
        %v1380 = vlaneseq
        %v1381 = vshrl.u32 %v1380, 7
        %v1382 = vsub.s32 1, %v1381
        %v1383 = vrot.slane %v1374, %v1382
        %v1386 = vmul.f32 %v1365, %v1379
        %v1387 = vmul.f32 %v1369, %v1383
        %v1388 = vmul.f32 %v1366, %v1379
        %v1389 = vmul.f32 %v1370, %v1383
        %v1390 = vmul.f32 %v1367, %v1379
        %v1391 = vmul.f32 %v1371, %v1383
        %v1392 = vmul.f32 %v1368, %v1379
        %v1393 = vmul.f32 %v1372, %v1383
        %s1394 = scalar_lea.vmem [#allocation2], 112
        %v1395 = vld [vmem:[%s1394] sm:$0xf]
        %v1396 = vld [vmem:[%s1394 + $0x4] sm:$0xf]
        %v1397 = vld [vmem:[%s1394 + $0x8] sm:$0xf]
        %v1398 = vld [vmem:[%s1394 + $0xc] sm:$0xf]
        %v1399 = vpack.c.bf16 %v1388, %v1386
        %v1400 = vpack.c.bf16 %v1389, %v1387
        %v1401 = vpack.c.bf16 %v1392, %v1390
        %v1402 = vpack.c.bf16 %v1393, %v1391
        %v1407 = vunpack.c.l.b16 %v1395
        %v1408 = vunpack.c.l.b16 %v1396
        %v1409 = vunpack.c.l.b16 %v1397
        %v1410 = vunpack.c.l.b16 %v1398
        %v1411 = vpack.c.b16 %v1408, %v1407
        %v1412 = vpack.c.b16 %v1410, %v1409
        %v1414 = vsel %vm605, %v1411, 0
        %v1417 = vsel %vm605, %v1412, 0
        %1419 = vmatprep.subr.bf16.mxu0 %v1400
        %1420 = vmatpush1.bf16.msra.mxu0 %v1399
        %1421 = vmatprep.subr.bf16.mxu0 %v1402
        %1422 = vmatpush1.bf16.msra.mxu0 %v1401
        %1423 = vmatprep.subr.bf16.mxu0 0
        %1424 = vmatpush1.bf16.msra.mxu0 0
        %1425 = vmatprep.subr.bf16.mxu0 0
        %1426 = vmatpush1.bf16.msra.mxu0 0
        %1427 = vmatprep.subr.bf16.mxu0 0
        %1428 = vmatpush1.bf16.msra.mxu0 0
        %1429 = vmatprep.subr.bf16.mxu0 0
        %1430 = vmatpush1.bf16.msra.mxu0 0
        %1431 = vmatprep.subr.bf16.mxu0 0
        %1432 = vmatpush1.bf16.msra.mxu0 0
        %1433 = vmatprep.subr.bf16.mxu0 0
        %1434 = vmatpush1.bf16.msra.mxu0 0
        %1435 = vmatprep.subr.bf16.mxu0 0
        %1436 = vmatpush1.bf16.msra.mxu0 0
        %1437 = vmatprep.subr.bf16.mxu0 0
        %1438 = vmatpush1.bf16.msra.mxu0 0
        %1439 = vmatprep.subr.bf16.mxu0 0
        %1440 = vmatpush1.bf16.msra.mxu0 0
        %1441 = vmatprep.subr.bf16.mxu0 0
        %1442 = vmatpush1.bf16.msra.mxu0 0
        %1443 = vmatprep.subr.bf16.mxu0 0
        %1444 = vmatpush1.bf16.msra.mxu0 0
        %1445 = vmatprep.subr.bf16.mxu0 0
        %1446 = vmatpush1.bf16.msra.mxu0 0
        %1447 = vmatprep.subr.bf16.mxu0 0
        %1448 = vmatpush1.bf16.msra.mxu0 0
        %1449 = vmatprep.subr.bf16.mxu0 0
        %1450 = vmatpush1.bf16.msra.mxu0 0
        %1451 = vmatprep.mubr.bf16.mxu0 0
        %1452 = vmatmul.mubr.bf16.gmra.mrb[0].mxu0 %v1414
        %v1453 = vpop.f32.mrb[0].mxu0
        %v1454 = vadd.f32 0.0, %v1453
        %v1455 = vpop.f32.mrb[0].mxu0
        %v1456 = vadd.f32 0.0, %v1455
        %v1457 = vpop.f32.mrb[0].mxu0
        %v1458 = vadd.f32 0.0, %v1457
        %v1459 = vpop.f32.mrb[0].mxu0
        %v1460 = vadd.f32 0.0, %v1459
        %1461 = vmatprep.mubr.bf16.mxu0 0
        %1462 = vmatmul.mubr.bf16.gmra.mrb[0].mxu0 %v1417
        %v1463 = vpop.f32.mrb[0].mxu0
        %v1464 = vadd.f32 0.0, %v1463
        %v1465 = vpop.f32.mrb[0].mxu0
        %v1466 = vadd.f32 0.0, %v1465
        %v1467 = vpop.f32.mrb[0].mxu0
        %v1468 = vadd.f32 0.0, %v1467
        %v1469 = vpop.f32.mrb[0].mxu0
        %v1470 = vadd.f32 0.0, %v1469
        %1471 = vdwg.mxu0
        %v1472 = vadd.f32 %v1340, %v1454
        %v1473 = vadd.f32 %v1341, %v1456
        %v1474 = vadd.f32 %v1342, %v1458
        %v1475 = vadd.f32 %v1343, %v1460
        %v1476 = vadd.f32 %v1344, %v1464
        %v1477 = vadd.f32 %v1345, %v1466
        %v1478 = vadd.f32 %v1346, %v1468
        %v1479 = vadd.f32 %v1347, %v1470
        %1480 = vrot.lane.b32.xlu0 %v477, 111
        %v1481 = vpop.permute.xlu0 %1480
        %1482 = vrot.lane.b32.xlu0 %v479, 111
        %v1483 = vpop.permute.xlu0 %1482
        %1484 = vrot.lane.b32.xlu0 %v481, 111
        %v1485 = vpop.permute.xlu0 %1484
        %1486 = vrot.lane.b32.xlu0 %v483, 111
        %v1487 = vpop.permute.xlu0 %1486
        %1488 = vrot.lane.b32.xlu0 %v478, 111
        %v1489 = vpop.permute.xlu0 %1488
        %1490 = vrot.lane.b32.xlu0 %v480, 111
        %v1491 = vpop.permute.xlu0 %1490
        %1492 = vrot.lane.b32.xlu0 %v482, 111
        %v1493 = vpop.permute.xlu0 %1492
        %1494 = vrot.lane.b32.xlu0 %v484, 111
        %v1495 = vpop.permute.xlu0 %1494
        %vm1496 = vcmp.lt.s32.totalorder %v502, 111
        %v1497 = vsel %vm1496, %v1481, %v1489
        %v1498 = vsel %vm1496, %v1483, %v1491
        %v1499 = vsel %vm1496, %v1485, %v1493
        %v1500 = vsel %vm1496, %v1487, %v1495
        %v1501 = vsel %vm1496, %v1489, %v1481
        %v1502 = vsel %vm1496, %v1491, %v1483
        %v1503 = vsel %vm1496, %v1493, %v1485
        %v1504 = vsel %vm1496, %v1495, %v1487
        %s1505 = scalar_lea.vmem %s1, 16
        %v1506 = vld [vmem:[%s1505] ss:$8 sm:$0x3]
        %v1508 = vlaneseq
        %v1509 = vshrl.u32 %v1508, 7
        %v1510 = vsub.s32 0, %v1509
        %v1511 = vrot.slane %v1506, %v1510
        %v1512 = vlaneseq
        %v1513 = vshrl.u32 %v1512, 7
        %v1514 = vsub.s32 1, %v1513
        %v1515 = vrot.slane %v1506, %v1514
        %v1518 = vmul.f32 %v1497, %v1511
        %v1519 = vmul.f32 %v1501, %v1515
        %v1520 = vmul.f32 %v1498, %v1511
        %v1521 = vmul.f32 %v1502, %v1515
        %v1522 = vmul.f32 %v1499, %v1511
        %v1523 = vmul.f32 %v1503, %v1515
        %v1524 = vmul.f32 %v1500, %v1511
        %v1525 = vmul.f32 %v1504, %v1515
        %s1526 = scalar_lea.vmem [#allocation2], 128
        %v1527 = vld [vmem:[%s1526] sm:$0xf]
        %v1528 = vld [vmem:[%s1526 + $0x4] sm:$0xf]
        %v1529 = vld [vmem:[%s1526 + $0x8] sm:$0xf]
        %v1530 = vld [vmem:[%s1526 + $0xc] sm:$0xf]
        %v1531 = vpack.c.bf16 %v1520, %v1518
        %v1532 = vpack.c.bf16 %v1521, %v1519
        %v1533 = vpack.c.bf16 %v1524, %v1522
        %v1534 = vpack.c.bf16 %v1525, %v1523
        %v1539 = vunpack.c.l.b16 %v1527
        %v1540 = vunpack.c.l.b16 %v1528
        %v1541 = vunpack.c.l.b16 %v1529
        %v1542 = vunpack.c.l.b16 %v1530
        %v1543 = vpack.c.b16 %v1540, %v1539
        %v1544 = vpack.c.b16 %v1542, %v1541
        %v1546 = vsel %vm605, %v1543, 0
        %v1549 = vsel %vm605, %v1544, 0
        %1551 = vmatprep.subr.bf16.mxu0 %v1532
        %1552 = vmatpush1.bf16.msra.mxu0 %v1531
        %1553 = vmatprep.subr.bf16.mxu0 %v1534
        %1554 = vmatpush1.bf16.msra.mxu0 %v1533
        %1555 = vmatprep.subr.bf16.mxu0 0
        %1556 = vmatpush1.bf16.msra.mxu0 0
        %1557 = vmatprep.subr.bf16.mxu0 0
        %1558 = vmatpush1.bf16.msra.mxu0 0
        %1559 = vmatprep.subr.bf16.mxu0 0
        %1560 = vmatpush1.bf16.msra.mxu0 0
        %1561 = vmatprep.subr.bf16.mxu0 0
        %1562 = vmatpush1.bf16.msra.mxu0 0
        %1563 = vmatprep.subr.bf16.mxu0 0
        %1564 = vmatpush1.bf16.msra.mxu0 0
        %1565 = vmatprep.subr.bf16.mxu0 0
        %1566 = vmatpush1.bf16.msra.mxu0 0
        %1567 = vmatprep.subr.bf16.mxu0 0
        %1568 = vmatpush1.bf16.msra.mxu0 0
        %1569 = vmatprep.subr.bf16.mxu0 0
        %1570 = vmatpush1.bf16.msra.mxu0 0
        %1571 = vmatprep.subr.bf16.mxu0 0
        %1572 = vmatpush1.bf16.msra.mxu0 0
        %1573 = vmatprep.subr.bf16.mxu0 0
        %1574 = vmatpush1.bf16.msra.mxu0 0
        %1575 = vmatprep.subr.bf16.mxu0 0
        %1576 = vmatpush1.bf16.msra.mxu0 0
        %1577 = vmatprep.subr.bf16.mxu0 0
        %1578 = vmatpush1.bf16.msra.mxu0 0
        %1579 = vmatprep.subr.bf16.mxu0 0
        %1580 = vmatpush1.bf16.msra.mxu0 0
        %1581 = vmatprep.subr.bf16.mxu0 0
        %1582 = vmatpush1.bf16.msra.mxu0 0
        %1583 = vmatprep.mubr.bf16.mxu0 0
        %1584 = vmatmul.mubr.bf16.gmra.mrb[0].mxu0 %v1546
        %v1585 = vpop.f32.mrb[0].mxu0
        %v1586 = vadd.f32 0.0, %v1585
        %v1587 = vpop.f32.mrb[0].mxu0
        %v1588 = vadd.f32 0.0, %v1587
        %v1589 = vpop.f32.mrb[0].mxu0
        %v1590 = vadd.f32 0.0, %v1589
        %v1591 = vpop.f32.mrb[0].mxu0
        %v1592 = vadd.f32 0.0, %v1591
        %1593 = vmatprep.mubr.bf16.mxu0 0
        %1594 = vmatmul.mubr.bf16.gmra.mrb[0].mxu0 %v1549
        %v1595 = vpop.f32.mrb[0].mxu0
        %v1596 = vadd.f32 0.0, %v1595
        %v1597 = vpop.f32.mrb[0].mxu0
        %v1598 = vadd.f32 0.0, %v1597
        %v1599 = vpop.f32.mrb[0].mxu0
        %v1600 = vadd.f32 0.0, %v1599
        %v1601 = vpop.f32.mrb[0].mxu0
        %v1602 = vadd.f32 0.0, %v1601
        %1603 = vdwg.mxu0
        %v1604 = vadd.f32 %v1472, %v1586
        %v1605 = vadd.f32 %v1473, %v1588
        %v1606 = vadd.f32 %v1474, %v1590
        %v1607 = vadd.f32 %v1475, %v1592
        %v1608 = vadd.f32 %v1476, %v1596
        %v1609 = vadd.f32 %v1477, %v1598
        %v1610 = vadd.f32 %v1478, %v1600
        %v1611 = vadd.f32 %v1479, %v1602
        %v1612 = vld [vmem:[%s5] sm:$0xff]
        %v1613 = vld [vmem:[%s5 + $0x8] sm:$0xff]
        %v1614 = vld [vmem:[%s5 + $0x10] sm:$0xff]
        %v1615 = vld [vmem:[%s5 + $0x18] sm:$0xff]
        %1617 = vset.pattern.permute.xlu0 0
        %1618 = vperm.xlu0 %1617, %v1612
        %v1619 = vpop.permute.xlu0 %1618
        %1622 = vset.pattern.permute.xlu0 0
        %1623 = vperm.xlu0 %1622, %v1613
        %v1624 = vpop.permute.xlu0 %1623
        %1627 = vset.pattern.permute.xlu0 0
        %1628 = vperm.xlu0 %1627, %v1614
        %v1629 = vpop.permute.xlu0 %1628
        %1632 = vset.pattern.permute.xlu0 0
        %1633 = vperm.xlu0 %1632, %v1615
        %v1634 = vpop.permute.xlu0 %1633
        %v1636 = vadd.f32 %v1604, %v1619
        %v1637 = vadd.f32 %v1605, %v1619
        %v1638 = vadd.f32 %v1606, %v1624
        %v1639 = vadd.f32 %v1607, %v1624
        %v1640 = vadd.f32 %v1608, %v1629
        %v1641 = vadd.f32 %v1609, %v1629
        %v1642 = vadd.f32 %v1610, %v1634
        %v1643 = vadd.f32 %v1611, %v1634
        %vm1644 = vcmp.ge.f32.partialorder %v1636, 0.0
        %vm1645 = vcmp.ge.f32.partialorder %v1637, 0.0
        %vm1646 = vcmp.ge.f32.partialorder %v1638, 0.0
        %vm1647 = vcmp.ge.f32.partialorder %v1639, 0.0
        %vm1648 = vcmp.ge.f32.partialorder %v1640, 0.0
        %vm1649 = vcmp.ge.f32.partialorder %v1641, 0.0
        %vm1650 = vcmp.ge.f32.partialorder %v1642, 0.0
        %vm1651 = vcmp.ge.f32.partialorder %v1643, 0.0
        %v1652 = vmul.f32 %v1636, 0.3
        %v1653 = vmul.f32 %v1637, 0.3
        %v1654 = vmul.f32 %v1638, 0.3
        %v1655 = vmul.f32 %v1639, 0.3
        %v1656 = vmul.f32 %v1640, 0.3
        %v1657 = vmul.f32 %v1641, 0.3
        %v1658 = vmul.f32 %v1642, 0.3
        %v1659 = vmul.f32 %v1643, 0.3
        %v1660 = vsel %vm1644, %v1636, %v1652
        %v1661 = vsel %vm1645, %v1637, %v1653
        %v1662 = vsel %vm1646, %v1638, %v1654
        %v1663 = vsel %vm1647, %v1639, %v1655
        %v1664 = vsel %vm1648, %v1640, %v1656
        %v1665 = vsel %vm1649, %v1641, %v1657
        %v1666 = vsel %vm1650, %v1642, %v1658
        %v1667 = vsel %vm1651, %v1643, %v1659
        %v1668 = vld [vmem:[%s6] sm:$0xf]
        %v1669 = vld [vmem:[%s7] sm:$0xf]
        %1671 = vset.pattern.permute.xlu0 0
        %1672 = vperm.xlu0 %1671, %v1669
        %v1673 = vpop.permute.xlu0 %1672
        %v1676 = vsel %vm605, %v1668, 0
        %1678 = vmatprep.subr.mxu0 %v1661
        %1679 = vmatpush1.msra.mxu0 %v1660
        %1680 = vmatprep.subr.mxu0 %v1663
        %1681 = vmatpush1.msra.mxu0 %v1662
        %1682 = vmatprep.subr.mxu0 %v1665
        %1683 = vmatpush1.msra.mxu0 %v1664
        %1684 = vmatprep.subr.mxu0 %v1667
        %1685 = vmatpush1.msra.mxu0 %v1666
        %1686 = vmatprep.subr.mxu0 0.0
        %1687 = vmatpush1.msra.mxu0 0.0
        %1688 = vmatprep.subr.mxu0 0.0
        %1689 = vmatpush1.msra.mxu0 0.0
        %1690 = vmatprep.subr.mxu0 0.0
        %1691 = vmatpush1.msra.mxu0 0.0
        %1692 = vmatprep.subr.mxu0 0.0
        %1693 = vmatpush1.msra.mxu0 0.0
        %1694 = vmatprep.subr.mxu0 0.0
        %1695 = vmatpush1.msra.mxu0 0.0
        %1696 = vmatprep.subr.mxu0 0.0
        %1697 = vmatpush1.msra.mxu0 0.0
        %1698 = vmatprep.subr.mxu0 0.0
        %1699 = vmatpush1.msra.mxu0 0.0
        %1700 = vmatprep.subr.mxu0 0.0
        %1701 = vmatpush1.msra.mxu0 0.0
        %1702 = vmatprep.subr.mxu0 0.0
        %1703 = vmatpush1.msra.mxu0 0.0
        %1704 = vmatprep.subr.mxu0 0.0
        %1705 = vmatpush1.msra.mxu0 0.0
        %1706 = vmatprep.subr.mxu0 0.0
        %1707 = vmatpush1.msra.mxu0 0.0
        %1708 = vmatprep.subr.mxu0 0.0
        %1709 = vmatpush1.msra.mxu0 0.0
        %1710 = vmatprep.subr.mxu0 0.0
        %1711 = vmatpush1.msra.mxu0 0.0
        %1712 = vmatprep.subr.mxu0 0.0
        %1713 = vmatpush1.msra.mxu0 0.0
        %1714 = vmatprep.subr.mxu0 0.0
        %1715 = vmatpush1.msra.mxu0 0.0
        %1716 = vmatprep.subr.mxu0 0.0
        %1717 = vmatpush1.msra.mxu0 0.0
        %1718 = vmatprep.subr.mxu0 0.0
        %1719 = vmatpush1.msra.mxu0 0.0
        %1720 = vmatprep.subr.mxu0 0.0
        %1721 = vmatpush1.msra.mxu0 0.0
        %1722 = vmatprep.subr.mxu0 0.0
        %1723 = vmatpush1.msra.mxu0 0.0
        %1724 = vmatprep.subr.mxu0 0.0
        %1725 = vmatpush1.msra.mxu0 0.0
        %1726 = vmatprep.subr.mxu0 0.0
        %1727 = vmatpush1.msra.mxu0 0.0
        %1728 = vmatprep.subr.mxu0 0.0
        %1729 = vmatpush1.msra.mxu0 0.0
        %1730 = vmatprep.subr.mxu0 0.0
        %1731 = vmatpush1.msra.mxu0 0.0
        %1732 = vmatprep.subr.mxu0 0.0
        %1733 = vmatpush1.msra.mxu0 0.0
        %1734 = vmatprep.subr.mxu0 0.0
        %1735 = vmatpush1.msra.mxu0 0.0
        %1736 = vmatprep.subr.mxu0 0.0
        %1737 = vmatpush1.msra.mxu0 0.0
        %1738 = vmatprep.subr.mxu0 0.0
        %1739 = vmatpush1.msra.mxu0 0.0
        %1740 = vmatprep.subr.mxu0 0.0
        %1741 = vmatpush1.msra.mxu0 0.0
        %1742 = vmatprep.mubr.f32.mxu0 0.0
        %1743 = vmatmul.mubr.f32.gmra.mrb[0].mxu0 %v1676
        %v1744 = vpop.f32.mrb[0].mxu0
        %v1745 = vadd.f32 %v1673, %v1744
        %v1746 = vpop.f32.mrb[0].mxu0
        %v1747 = vadd.f32 %v1673, %v1746
        %1748 = vdwg.mxu0
        %1750 = vst [vmem:[%s314] sm:$0xf] %v323
        %1751 = vst [vmem:[%s314 + $0x8] sm:$0xf] %v353
        %v1754 = vrot.slane %v1745, 4
        %v1755 = vrot.slane %v1747, 4
        %1758 = vst [vmem:[%s314] sm:$0xf0] %v1754
        %1759 = vst [vmem:[%s314 + $0x8] sm:$0xf0] %v1755
        %s1760 = sand.u32 %s204, 1
        %s1761 = scalar_lea.sflag [#allocation4], %s1760
        %s1762 = sand.u32 %s204, 1
        %s1763 = smul.addr %s1762, 16
        %s1764 = scalar_lea.vmem [#allocation5], %s1763
        // Predicated region
        $region57: #{tpu_custom_call.1} parent=51 // pred_check
          %p1765 = pneg %p214
        $region58: #{tpu_custom_call.1} parent=51 // pred_check_branch
          %1767 = sbr.rel (%p1765) target = $region60
        $region59: #{tpu_custom_call.1} parent=51 // pred_region
          %s1768 = smul.u32 2, %s23
          %s1770 = ssub.s32 256, 256
          %1771 = vsyncadd %s1761, %s1770
          %s1772 = smul.addr %s1768, 128
          %s1773 = scalar_lea.hbm %s8, %s1772
          %s1775 = sshll.u32 %s1764, 4
          %s1776 = int_to_ptr.vmem [resolvable:$true] %s1775
          %1778 = dma.vmem_to_hbm [thread:$0]  %s1776, 256, %s1773, %s1761
        $region60: #{tpu_custom_call.1} parent=51 // pred_fallthru
          _
      $region52: #{tpu_custom_call.1} parent=5 // pred_fallthru
        _
      %p1779 = scmp.le.s32.totalorder 2, %s18
      // Predicated region
      $region61: #{tpu_custom_call.1} parent=5 // pred_check
        %p1780 = pneg %p1779
      $region62: #{tpu_custom_call.1} parent=5 // pred_check_branch
        %1782 = sbr.rel (%p1780) target = $region64
      $region63: #{tpu_custom_call.1} parent=5 // pred_region
        %s1783 = ssub.s32 %s18, 2
        // Predicated region
        $region65: #{tpu_custom_call.1} parent=63 // pred_check
          %p1784 = pneg %p220
        $region66: #{tpu_custom_call.1} parent=63 // pred_check_branch
          %1786 = sbr.rel (%p1784) target = $region68
        $region67: #{tpu_custom_call.1} parent=63 // pred_region
          %s1787 = sand.u32 %s205, 1
          %s1788 = scalar_lea.sflag [#allocation4], %s1787
          %s1789 = sand.u32 %s205, 1
          %s1790 = smul.addr %s1789, 16
          %s1791 = scalar_lea.vmem [#allocation5], %s1790
          %1792 = dma.done %s1788, 256
        $region68: #{tpu_custom_call.1} parent=63 // pred_fallthru
          _
      $region64: #{tpu_custom_call.1} parent=5 // pred_fallthru
        _
    $region6: #{tpu_custom_call.1} parent=1 // loop_footer
      %s22 = sadd.s32 1, %s18
    $region7: #{tpu_custom_call.1} parent=1 // loop_footer_branch
      %17 = sbr.rel target = $region3
    $region8: #{tpu_custom_call.1} parent=1 // loop_exit
      _
    %1793 = vsyncpa [#allocation3], 1
    %s1794 = scalar_lea.sflag [#allocation3], 1
    %1795 = vsyncpa %s1794, 1
    %1796 = vsyncpa [#allocation4], 1
    %s1797 = scalar_lea.sflag [#allocation4], 1
    %1798 = vsyncpa %s1797, 1

</llo_original>
